<compile_context>
chip_gen: v6e
topology: v6e:2x2x1
jax: 0.10.0
libtpu: 0.0.40
codegen_flags: <defaults>
</compile_context>

<pallas_src>
import functools

import jax
import jax.numpy as jnp
from jax.experimental import pallas as pl
from jax.experimental.pallas import tpu as pltpu


# ----------------------------------------------------------------------------
# Kernels
# ----------------------------------------------------------------------------
def _prep_inputs(xfull_ref, xtile_ref, impute_nan, pre_leaky):
    xfull = xfull_ref[...]
    xtile = xtile_ref[...]
    if impute_nan:  # torch.where(isnan(X), 0, X)
        xfull = jnp.where(jnp.isnan(xfull), jnp.zeros_like(xfull), xfull)
        xtile = jnp.where(jnp.isnan(xtile), jnp.zeros_like(xtile), xtile)
    if pre_leaky:   # F.leaky_relu on the previous layer output (dropout=id)
        xfull = jnp.where(xfull >= 0, xfull, jnp.float32(0.01) * xfull)
        xtile = jnp.where(xtile >= 0, xtile, jnp.float32(0.01) * xtile)
    return xfull, xtile


def _sage_tile(adj_ref, xfull_ref, xtile_ref, wrel_ref, wroot_ref, b_ref,
               impute_nan, pre_leaky):
    xfull, xtile = _prep_inputs(xfull_ref, xtile_ref, impute_nan, pre_leaky)

    adj = adj_ref[...]                                       # (TILE_R, N) bf16
    # Row degree over the FULL column extent; exact reciprocal (cheap, not on
    # the MXU critical path).
    deg = jnp.sum(adj.astype(jnp.float32), axis=-1, keepdims=True)
    inv_deg = jnp.float32(1.0) / jnp.maximum(deg, jnp.float32(1.0))

    # agg = (adj @ x) / deg   -- bf16 MXU inputs, f32 accumulation.
    agg = jnp.dot(adj, xfull.astype(jnp.bfloat16),
                  preferred_element_type=jnp.float32) * inv_deg

    # out = agg @ W_rel + x_tile @ W_root + b   (two dots, no concat copy)
    out = (jnp.dot(agg.astype(jnp.bfloat16), wrel_ref[...],
                   preferred_element_type=jnp.float32)
           + jnp.dot(xtile.astype(jnp.bfloat16), wroot_ref[...],
                     preferred_element_type=jnp.float32)
           + b_ref[...])
    return out


def _sage_kernel(adj_ref, xfull_ref, xtile_ref, wrel_ref, wroot_ref, b_ref,
                 out_ref, *, impute_nan, pre_leaky):
    out = _sage_tile(adj_ref, xfull_ref, xtile_ref, wrel_ref, wroot_ref,
                     b_ref, impute_nan, pre_leaky)
    out_ref[...] = out.astype(out_ref.dtype)


def _sage_link_kernel(adj_ref, xfull_ref, xtile_ref, wrel_ref, wroot_ref,
                      b_ref, wl_ref, bl_ref, out_ref, link_ref, *,
                      impute_nan, pre_leaky):
    out = _sage_tile(adj_ref, xfull_ref, xtile_ref, wrel_ref, wroot_ref,
                     b_ref, impute_nan, pre_leaky)
    out_ref[...] = out.astype(out_ref.dtype)
    # Link predictor: VPU broadcast-multiply + lane reduction (MXU stays free).
    link = jnp.sum(out * wl_ref[...], axis=-1, keepdims=True) + bl_ref[...]
    link_ref[...] = link.astype(link_ref.dtype)


# ----------------------------------------------------------------------------
# pallas_call wrappers
# ----------------------------------------------------------------------------
_COMPILER_PARAMS = pltpu.CompilerParams(
    dimension_semantics=("parallel",),        # shard row tiles across TCs
    vmem_limit_bytes=32 * 1024 * 1024,        # safe budget on v5e/v6e/v7x
)


def _call_sage(adj_bf16, x, layer_params, row_tile, *, impute_nan, pre_leaky,
               link_params=None):
    n = adj_bf16.shape[0]
    f_in = x.shape[1]
    f_out = layer_params["w_rel"].shape[1]
    grid = (n // row_tile,)

    adj_spec = pl.BlockSpec((row_tile, n), lambda r: (r, 0))     # streamed slab
    xfull_spec = pl.BlockSpec((n, f_in), lambda r: (0, 0))       # resident
    xtile_spec = pl.BlockSpec((row_tile, f_in), lambda r: (r, 0))
    w_spec = pl.BlockSpec((f_in, f_out), lambda r: (0, 0))       # resident
    b_spec = pl.BlockSpec((1, f_out), lambda r: (0, 0))
    h_spec = pl.BlockSpec((row_tile, f_out), lambda r: (r, 0))

    w_rel = layer_params["w_rel"].astype(jnp.bfloat16)
    w_root = layer_params["w_root"].astype(jnp.bfloat16)
    bias = layer_params["b_rel"].reshape(1, f_out).astype(jnp.float32)

    if link_params is None:
        kern = functools.partial(_sage_kernel, impute_nan=impute_nan,
                                 pre_leaky=pre_leaky)
        return pl.pallas_call(
            kern,
            grid=grid,
            in_specs=[adj_spec, xfull_spec, xtile_spec, w_spec, w_spec, b_spec],
            out_specs=h_spec,
            out_shape=jax.ShapeDtypeStruct((n, f_out), jnp.float32),
            compiler_params=_COMPILER_PARAMS,
        )(adj_bf16, x, x, w_rel, w_root, bias)

    wl = link_params["w"].reshape(1, f_out).astype(jnp.float32)   # (1, out_c)
    bl = link_params["b"].reshape(1, 1).astype(jnp.float32)
    wl_spec = pl.BlockSpec((1, f_out), lambda r: (0, 0))
    bl_spec = pl.BlockSpec((1, 1), lambda r: (0, 0))
    link_spec = pl.BlockSpec((row_tile, 1), lambda r: (r, 0))

    kern = functools.partial(_sage_link_kernel, impute_nan=impute_nan,
                             pre_leaky=pre_leaky)
    return pl.pallas_call(
        kern,
        grid=grid,
        in_specs=[adj_spec, xfull_spec, xtile_spec, w_spec, w_spec, b_spec,
                  wl_spec, bl_spec],
        out_specs=(h_spec, link_spec),
        out_shape=(jax.ShapeDtypeStruct((n, f_out), jnp.float32),
                   jax.ShapeDtypeStruct((n, 1), jnp.float32)),
        compiler_params=_COMPILER_PARAMS,
    )(adj_bf16, x, x, w_rel, w_root, bias, wl, bl)


# ----------------------------------------------------------------------------
# Student forward (inference semantics)
# ----------------------------------------------------------------------------
@functools.partial(jax.jit, static_argnames=("row_tile",))
def student_forward(params, X, Adj, row_tile=256):
    n = X.shape[0]
    rt = row_tile if (row_tile <= n and n % row_tile == 0) else n

    adj_bf = Adj.astype(jnp.bfloat16)   # 0/1 adjacency is exact in bf16
    x = X.astype(jnp.float32)

    h1 = _call_sage(adj_bf, x, params["gcn1"], rt,
                    impute_nan=True, pre_leaky=False)
    # dropout (eval) == identity between layers.
    h2 = _call_sage(adj_bf, h1, params["gcn2"], rt,
                    impute_nan=False, pre_leaky=True)
    h3, link = _call_sage(adj_bf, h2, params["gcn3"], rt,
                          impute_nan=False, pre_leaky=True,
                          link_params=params["link"])

    # DenseSAGEConv unsqueezes 2-D inputs to a batch of size 1.
    return h3[None], [h1[None], h2[None], h3[None]], link[None]


# ----------------------------------------------------------------------------
# Deterministic parameter init (synthetic; shapes follow the module __init__)
# ----------------------------------------------------------------------------
def init_params(key, in_channels, hid_channels, out_channels):
    def lin_w(k, fan_in, fan_out):
        bound = 1.0 / jnp.sqrt(jnp.float32(fan_in))
        return jax.random.uniform(k, (fan_in, fan_out), jnp.float32, -bound, bound)

    keys = jax.random.split(key, 10)
    return {
        "gcn1": {"w_rel": lin_w(keys[0], in_channels, hid_channels),
                 "b_rel": jnp.zeros((hid_channels,), jnp.float32),
                 "w_root": lin_w(keys[1], in_channels, hid_channels)},
        "gcn2": {"w_rel": lin_w(keys[2], hid_channels, hid_channels),
                 "b_rel": jnp.zeros((hid_channels,), jnp.float32),
                 "w_root": lin_w(keys[3], hid_channels, hid_channels)},
        "gcn3": {"w_rel": lin_w(keys[4], hid_channels, out_channels),
                 "b_rel": jnp.zeros((out_channels,), jnp.float32),
                 "w_root": lin_w(keys[5], hid_channels, out_channels)},
        "link": {"w": lin_w(keys[6], out_channels, 1),
                 "b": jax.random.uniform(keys[7], (1,), jnp.float32, -0.1, 0.1)},
    }


# ----------------------------------------------------------------------------
# Pure-JAX (f32) reference for a correctness spot-check
# ----------------------------------------------------------------------------
def reference_forward(params, X, Adj):
    def sage(adj, x, p):
        deg = jnp.maximum(adj.sum(-1, keepdims=True), 1.0)
        agg = (adj @ x) / deg
        return agg @ p["w_rel"] + p["b_rel"] + x @ p["w_root"]

    x = jnp.where(jnp.isnan(X), 0.0, X)
    lrelu = lambda v: jnp.where(v >= 0, v, 0.01 * v)
    h1 = sage(Adj, x, params["gcn1"])
    h2 = sage(Adj, lrelu(h1), params["gcn2"])
    h3 = sage(Adj, lrelu(h2), params["gcn3"])
    lp = h3 @ params["link"]["w"] + params["link"]["b"]
    return h3[None], [h1[None], h2[None], h3[None]], lp[None]


if __name__ == "__main__":
    N, IN_C, HID_C, OUT_C = 64, 8, 32, 16
    ROW_TILE = 16   # 4 grid steps -> exercises streaming / parallel semantics

    key = jax.random.PRNGKey(0)
    k_param, k_x, k_adj, k_nan = jax.random.split(key, 4)

    params = init_params(k_param, IN_C, HID_C, OUT_C)

    X = jax.random.normal(k_x, (N, IN_C), jnp.float32)
    # Inject a few NaNs to exercise the imputation path.
    nan_mask = jax.random.bernoulli(k_nan, 0.1, (N, IN_C))
    X = jnp.where(nan_mask, jnp.float32(jnp.nan), X)

    # Random symmetric 0/1 adjacency with self loops.
    A = (jax.random.uniform(k_adj, (N, N)) < 0.2).astype(jnp.float32)
    Adj = jnp.clip(A + A.T + jnp.eye(N, dtype=jnp.float32), 0.0, 1.0)

    h3, mids, link_pred = student_forward(params, X, Adj, row_tile=ROW_TILE)
    jax.block_until_ready((h3, mids, link_pred))

    # Spot-check against the plain-JAX f32 reference.  Tolerance accounts for
    # bf16 MXU inputs (f32 accumulation); the degree reciprocal is now exact.
    r_h3, r_mids, r_lp = reference_forward(params, X, Adj)
    tol = dict(atol=3e-2, rtol=3e-2)
    assert jnp.allclose(h3, r_h3, **tol)
    assert all(jnp.allclose(a, b, **tol) for a, b in zip(mids, r_mids))
    assert jnp.allclose(link_pred, r_lp, **tol)

    print("KERNEL_OK")
</pallas_src>

<mosaic_0001>
module attributes {stable_mosaic.version = 11 : i64} {
  func.func @_sage_kernel(%arg0: i32, %arg1: memref<16x64xbf16, #tpu.memory_space<vmem>>, %arg2: memref<64x8xf32, #tpu.memory_space<vmem>>, %arg3: memref<16x8xf32, #tpu.memory_space<vmem>>, %arg4: memref<8x32xbf16, #tpu.memory_space<vmem>>, %arg5: memref<8x32xbf16, #tpu.memory_space<vmem>>, %arg6: memref<1x32xf32, #tpu.memory_space<vmem>>, %arg7: memref<16x32xf32, #tpu.memory_space<vmem>>) attributes {dimension_semantics = [#tpu.dimension_semantics<parallel>], iteration_bounds = array<i64: 4>, scalar_prefetch = 0 : i64, scratch_operands = 0 : i64, tpu.core_type = #tpu.core_type<tc>, window_params = [{transform_indices = @transform_0, window_bounds = array<i64: 16, 64>}, {pipeline_mode = #tpu.pipeline_mode<synchronous>, transform_indices = @transform_1, window_bounds = array<i64: 64, 8>}, {transform_indices = @transform_2, window_bounds = array<i64: 16, 8>}, {pipeline_mode = #tpu.pipeline_mode<synchronous>, transform_indices = @transform_3, window_bounds = array<i64: 8, 32>}, {pipeline_mode = #tpu.pipeline_mode<synchronous>, transform_indices = @transform_4, window_bounds = array<i64: 8, 32>}, {pipeline_mode = #tpu.pipeline_mode<synchronous>, transform_indices = @transform_5, window_bounds = array<i64: 1, 32>}, {transform_indices = @transform_6, window_bounds = array<i64: 16, 32>}]} {
    %c0 = arith.constant 0 : index
    %c0_0 = arith.constant 0 : index
    %0 = vector.load %arg2[%c0, %c0_0] : memref<64x8xf32, #tpu.memory_space<vmem>>, vector<64x8xf32>
    %c0_1 = arith.constant 0 : index
    %c0_2 = arith.constant 0 : index
    %1 = vector.load %arg3[%c0_1, %c0_2] : memref<16x8xf32, #tpu.memory_space<vmem>>, vector<16x8xf32>
    %2 = arith.cmpf one, %0, %0 : vector<64x8xf32>
    %cst = arith.constant 0.000000e+00 : f32
    %3 = vector.broadcast %cst : f32 to vector<64x8xf32>
    %4 = arith.select %2, %3, %0 : vector<64x8xi1>, vector<64x8xf32>
    %5 = arith.cmpf one, %1, %1 : vector<16x8xf32>
    %cst_3 = arith.constant 0.000000e+00 : f32
    %6 = vector.broadcast %cst_3 : f32 to vector<16x8xf32>
    %7 = arith.select %5, %6, %1 : vector<16x8xi1>, vector<16x8xf32>
    %c0_4 = arith.constant 0 : index
    %c0_5 = arith.constant 0 : index
    %8 = vector.load %arg1[%c0_4, %c0_5] : memref<16x64xbf16, #tpu.memory_space<vmem>>, vector<16x64xbf16>
    %9 = arith.extf %8 : vector<16x64xbf16> to vector<16x64xf32>
    %cst_6 = arith.constant dense<0.000000e+00> : vector<16xf32>
    %10 = vector.multi_reduction <add>, %9, %cst_6 [1] : vector<16x64xf32> to vector<16xf32>
    %11 = vector.shape_cast %10 : vector<16xf32> to vector<16x1xf32>
    %cst_7 = arith.constant 1.000000e+00 : f32
    %12 = vector.broadcast %cst_7 : f32 to vector<16x1xf32>
    %13 = arith.maximumf %11, %12 : vector<16x1xf32>
    %cst_8 = arith.constant 1.000000e+00 : f32
    %14 = vector.broadcast %cst_8 : f32 to vector<16x1xf32>
    %15 = arith.divf %14, %13 : vector<16x1xf32>
    %16 = arith.truncf %4 : vector<64x8xf32> to vector<64x8xbf16>
    %cst_9 = arith.constant dense<0.000000e+00> : vector<16x8xf32>
    %17 = tpu.matmul %8, %16, %cst_9 {dimension_numbers = #tpu.dot_dimension_numbers<[1], [0], [0], [1], [0, 0, 1, 1], [], []>} : vector<16x64xbf16>, vector<64x8xbf16>, vector<16x8xf32> -> vector<16x8xf32>
    %18 = vector.broadcast %15 : vector<16x1xf32> to vector<16x8xf32>
    %19 = arith.mulf %17, %18 : vector<16x8xf32>
    %20 = arith.truncf %19 : vector<16x8xf32> to vector<16x8xbf16>
    %c0_10 = arith.constant 0 : index
    %c0_11 = arith.constant 0 : index
    %21 = vector.load %arg4[%c0_10, %c0_11] : memref<8x32xbf16, #tpu.memory_space<vmem>>, vector<8x32xbf16>
    %cst_12 = arith.constant dense<0.000000e+00> : vector<16x32xf32>
    %22 = tpu.matmul %20, %21, %cst_12 {dimension_numbers = #tpu.dot_dimension_numbers<[1], [0], [0], [1], [0, 0, 1, 1], [], []>} : vector<16x8xbf16>, vector<8x32xbf16>, vector<16x32xf32> -> vector<16x32xf32>
    %23 = arith.truncf %7 : vector<16x8xf32> to vector<16x8xbf16>
    %c0_13 = arith.constant 0 : index
    %c0_14 = arith.constant 0 : index
    %24 = vector.load %arg5[%c0_13, %c0_14] : memref<8x32xbf16, #tpu.memory_space<vmem>>, vector<8x32xbf16>
    %cst_15 = arith.constant dense<0.000000e+00> : vector<16x32xf32>
    %25 = tpu.matmul %23, %24, %cst_15 {dimension_numbers = #tpu.dot_dimension_numbers<[1], [0], [0], [1], [0, 0, 1, 1], [], []>} : vector<16x8xbf16>, vector<8x32xbf16>, vector<16x32xf32> -> vector<16x32xf32>
    %26 = arith.addf %22, %25 : vector<16x32xf32>
    %c0_16 = arith.constant 0 : index
    %c0_17 = arith.constant 0 : index
    %27 = vector.load %arg6[%c0_16, %c0_17] : memref<1x32xf32, #tpu.memory_space<vmem>>, vector<1x32xf32>
    %28 = vector.broadcast %27 : vector<1x32xf32> to vector<16x32xf32>
    %29 = arith.addf %26, %28 : vector<16x32xf32>
    %c0_18 = arith.constant 0 : index
    %c0_19 = arith.constant 0 : index
    %30 = vector.load %arg7[%c0_18, %c0_19] : memref<16x32xf32, #tpu.memory_space<vmem>>, vector<16x32xf32>
    tpu.vector_store %arg7[%c0_18, %c0_19], %29 {strides = array<i32>} : memref<16x32xf32, #tpu.memory_space<vmem>>, vector<16x32xf32>,
    return
  }
  func.func @transform_0(%arg0: i32) -> (i32, i32) {
    %c0_i32 = arith.constant 0 : i32
    %c0_i32_0 = arith.constant 0 : i32
    return %arg0, %c0_i32 : i32, i32
  }
  func.func @transform_1(%arg0: i32) -> (i32, i32) {
    %c0_i32 = arith.constant 0 : i32
    %c0_i32_0 = arith.constant 0 : i32
    %c0_i32_1 = arith.constant 0 : i32
    return %c0_i32, %c0_i32_0 : i32, i32
  }
  func.func @transform_2(%arg0: i32) -> (i32, i32) {
    %c0_i32 = arith.constant 0 : i32
    %c0_i32_0 = arith.constant 0 : i32
    return %arg0, %c0_i32 : i32, i32
  }
  func.func @transform_3(%arg0: i32) -> (i32, i32) {
    %c0_i32 = arith.constant 0 : i32
    %c0_i32_0 = arith.constant 0 : i32
    %c0_i32_1 = arith.constant 0 : i32
    return %c0_i32, %c0_i32_0 : i32, i32
  }
  func.func @transform_4(%arg0: i32) -> (i32, i32) {
    %c0_i32 = arith.constant 0 : i32
    %c0_i32_0 = arith.constant 0 : i32
    %c0_i32_1 = arith.constant 0 : i32
    return %c0_i32, %c0_i32_0 : i32, i32
  }
  func.func @transform_5(%arg0: i32) -> (i32, i32) {
    %c0_i32 = arith.constant 0 : i32
    %c0_i32_0 = arith.constant 0 : i32
    %c0_i32_1 = arith.constant 0 : i32
    return %c0_i32, %c0_i32_0 : i32, i32
  }
  func.func @transform_6(%arg0: i32) -> (i32, i32) {
    %c0_i32 = arith.constant 0 : i32
    %c0_i32_0 = arith.constant 0 : i32
    return %arg0, %c0_i32 : i32, i32
  }
}

module attributes {stable_mosaic.version = 11 : i64} {
  func.func @_sage_link_kernel(%arg0: i32, %arg1: memref<16x64xbf16, #tpu.memory_space<vmem>>, %arg2: memref<64x32xf32, #tpu.memory_space<vmem>>, %arg3: memref<16x32xf32, #tpu.memory_space<vmem>>, %arg4: memref<32x16xbf16, #tpu.memory_space<vmem>>, %arg5: memref<32x16xbf16, #tpu.memory_space<vmem>>, %arg6: memref<1x16xf32, #tpu.memory_space<vmem>>, %arg7: memref<1x16xf32, #tpu.memory_space<vmem>>, %arg8: memref<1x1xf32, #tpu.memory_space<vmem>>, %arg9: memref<16x16xf32, #tpu.memory_space<vmem>>, %arg10: memref<16x1xf32, #tpu.memory_space<vmem>>) attributes {dimension_semantics = [#tpu.dimension_semantics<parallel>], iteration_bounds = array<i64: 4>, scalar_prefetch = 0 : i64, scratch_operands = 0 : i64, tpu.core_type = #tpu.core_type<tc>, window_params = [{transform_indices = @transform_0, window_bounds = array<i64: 16, 64>}, {pipeline_mode = #tpu.pipeline_mode<synchronous>, transform_indices = @transform_1, window_bounds = array<i64: 64, 32>}, {transform_indices = @transform_2, window_bounds = array<i64: 16, 32>}, {pipeline_mode = #tpu.pipeline_mode<synchronous>, transform_indices = @transform_3, window_bounds = array<i64: 32, 16>}, {pipeline_mode = #tpu.pipeline_mode<synchronous>, transform_indices = @transform_4, window_bounds = array<i64: 32, 16>}, {pipeline_mode = #tpu.pipeline_mode<synchronous>, transform_indices = @transform_5, window_bounds = array<i64: 1, 16>}, {pipeline_mode = #tpu.pipeline_mode<synchronous>, transform_indices = @transform_6, window_bounds = array<i64: 1, 16>}, {pipeline_mode = #tpu.pipeline_mode<synchronous>, transform_indices = @transform_7, window_bounds = array<i64: 1, 1>}, {transform_indices = @transform_8, window_bounds = array<i64: 16, 16>}, {transform_indices = @transform_9, window_bounds = array<i64: 16, 1>}]} {
    %c0 = arith.constant 0 : index
    %c0_0 = arith.constant 0 : index
    %0 = vector.load %arg2[%c0, %c0_0] : memref<64x32xf32, #tpu.memory_space<vmem>>, vector<64x32xf32>
    %c0_1 = arith.constant 0 : index
    %c0_2 = arith.constant 0 : index
    %1 = vector.load %arg3[%c0_1, %c0_2] : memref<16x32xf32, #tpu.memory_space<vmem>>, vector<16x32xf32>
    %cst = arith.constant 0.000000e+00 : f32
    %2 = vector.broadcast %cst : f32 to vector<64x32xf32>
    %3 = arith.cmpf oge, %0, %2 : vector<64x32xf32>
    %cst_3 = arith.constant 0.00999999977 : f32
    %4 = vector.broadcast %cst_3 : f32 to vector<64x32xf32>
    %5 = arith.mulf %4, %0 : vector<64x32xf32>
    %6 = arith.select %3, %0, %5 : vector<64x32xi1>, vector<64x32xf32>
    %cst_4 = arith.constant 0.000000e+00 : f32
    %7 = vector.broadcast %cst_4 : f32 to vector<16x32xf32>
    %8 = arith.cmpf oge, %1, %7 : vector<16x32xf32>
    %cst_5 = arith.constant 0.00999999977 : f32
    %9 = vector.broadcast %cst_5 : f32 to vector<16x32xf32>
    %10 = arith.mulf %9, %1 : vector<16x32xf32>
    %11 = arith.select %8, %1, %10 : vector<16x32xi1>, vector<16x32xf32>
    %c0_6 = arith.constant 0 : index
    %c0_7 = arith.constant 0 : index
    %12 = vector.load %arg1[%c0_6, %c0_7] : memref<16x64xbf16, #tpu.memory_space<vmem>>, vector<16x64xbf16>
    %13 = arith.extf %12 : vector<16x64xbf16> to vector<16x64xf32>
    %cst_8 = arith.constant dense<0.000000e+00> : vector<16xf32>
    %14 = vector.multi_reduction <add>, %13, %cst_8 [1] : vector<16x64xf32> to vector<16xf32>
    %15 = vector.shape_cast %14 : vector<16xf32> to vector<16x1xf32>
    %cst_9 = arith.constant 1.000000e+00 : f32
    %16 = vector.broadcast %cst_9 : f32 to vector<16x1xf32>
    %17 = arith.maximumf %15, %16 : vector<16x1xf32>
    %cst_10 = arith.constant 1.000000e+00 : f32
    %18 = vector.broadcast %cst_10 : f32 to vector<16x1xf32>
    %19 = arith.divf %18, %17 : vector<16x1xf32>
    %20 = arith.truncf %6 : vector<64x32xf32> to vector<64x32xbf16>
    %cst_11 = arith.constant dense<0.000000e+00> : vector<16x32xf32>
    %21 = tpu.matmul %12, %20, %cst_11 {dimension_numbers = #tpu.dot_dimension_numbers<[1], [0], [0], [1], [0, 0, 1, 1], [], []>} : vector<16x64xbf16>, vector<64x32xbf16>, vector<16x32xf32> -> vector<16x32xf32>
    %22 = vector.broadcast %19 : vector<16x1xf32> to vector<16x32xf32>
    %23 = arith.mulf %21, %22 : vector<16x32xf32>
    %24 = arith.truncf %23 : vector<16x32xf32> to vector<16x32xbf16>
    %c0_12 = arith.constant 0 : index
    %c0_13 = arith.constant 0 : index
    %25 = vector.load %arg4[%c0_12, %c0_13] : memref<32x16xbf16, #tpu.memory_space<vmem>>, vector<32x16xbf16>
    %cst_14 = arith.constant dense<0.000000e+00> : vector<16x16xf32>
    %26 = tpu.matmul %24, %25, %cst_14 {dimension_numbers = #tpu.dot_dimension_numbers<[1], [0], [0], [1], [0, 0, 1, 1], [], []>} : vector<16x32xbf16>, vector<32x16xbf16>, vector<16x16xf32> -> vector<16x16xf32>
    %27 = arith.truncf %11 : vector<16x32xf32> to vector<16x32xbf16>
    %c0_15 = arith.constant 0 : index
    %c0_16 = arith.constant 0 : index
    %28 = vector.load %arg5[%c0_15, %c0_16] : memref<32x16xbf16, #tpu.memory_space<vmem>>, vector<32x16xbf16>
    %cst_17 = arith.constant dense<0.000000e+00> : vector<16x16xf32>
    %29 = tpu.matmul %27, %28, %cst_17 {dimension_numbers = #tpu.dot_dimension_numbers<[1], [0], [0], [1], [0, 0, 1, 1], [], []>} : vector<16x32xbf16>, vector<32x16xbf16>, vector<16x16xf32> -> vector<16x16xf32>
    %30 = arith.addf %26, %29 : vector<16x16xf32>
    %c0_18 = arith.constant 0 : index
    %c0_19 = arith.constant 0 : index
    %31 = vector.load %arg6[%c0_18, %c0_19] : memref<1x16xf32, #tpu.memory_space<vmem>>, vector<1x16xf32>
    %32 = vector.broadcast %31 : vector<1x16xf32> to vector<16x16xf32>
    %33 = arith.addf %30, %32 : vector<16x16xf32>
    %c0_20 = arith.constant 0 : index
    %c0_21 = arith.constant 0 : index
    %34 = vector.load %arg9[%c0_20, %c0_21] : memref<16x16xf32, #tpu.memory_space<vmem>>, vector<16x16xf32>
    tpu.vector_store %arg9[%c0_20, %c0_21], %33 {strides = array<i32>} : memref<16x16xf32, #tpu.memory_space<vmem>>, vector<16x16xf32>,
    %c0_22 = arith.constant 0 : index
    %c0_23 = arith.constant 0 : index
    %35 = vector.load %arg7[%c0_22, %c0_23] : memref<1x16xf32, #tpu.memory_space<vmem>>, vector<1x16xf32>
    %36 = vector.broadcast %35 : vector<1x16xf32> to vector<16x16xf32>
    %37 = arith.mulf %33, %36 : vector<16x16xf32>
    %cst_24 = arith.constant dense<0.000000e+00> : vector<16xf32>
    %38 = vector.multi_reduction <add>, %37, %cst_24 [1] : vector<16x16xf32> to vector<16xf32>
    %39 = vector.shape_cast %38 : vector<16xf32> to vector<16x1xf32>
    %c0_25 = arith.constant 0 : index
    %c0_26 = arith.constant 0 : index
    %40 = vector.load %arg8[%c0_25, %c0_26] : memref<1x1xf32, #tpu.memory_space<vmem>>, vector<1x1xf32>
    %41 = vector.broadcast %40 : vector<1x1xf32> to vector<16x1xf32>
    %42 = arith.addf %39, %41 : vector<16x1xf32>
    %c0_27 = arith.constant 0 : index
    %c0_28 = arith.constant 0 : index
    %43 = vector.load %arg10[%c0_27, %c0_28] : memref<16x1xf32, #tpu.memory_space<vmem>>, vector<16x1xf32>
    tpu.vector_store %arg10[%c0_27, %c0_28], %42 {strides = array<i32>} : memref<16x1xf32, #tpu.memory_space<vmem>>, vector<16x1xf32>,
    return
  }
  func.func @transform_0(%arg0: i32) -> (i32, i32) {
    %c0_i32 = arith.constant 0 : i32
    %c0_i32_0 = arith.constant 0 : i32
    return %arg0, %c0_i32 : i32, i32
  }
  func.func @transform_1(%arg0: i32) -> (i32, i32) {
    %c0_i32 = arith.constant 0 : i32
    %c0_i32_0 = arith.constant 0 : i32
    %c0_i32_1 = arith.constant 0 : i32
    return %c0_i32, %c0_i32_0 : i32, i32
  }
  func.func @transform_2(%arg0: i32) -> (i32, i32) {
    %c0_i32 = arith.constant 0 : i32
    %c0_i32_0 = arith.constant 0 : i32
    return %arg0, %c0_i32 : i32, i32
  }
  func.func @transform_3(%arg0: i32) -> (i32, i32) {
    %c0_i32 = arith.constant 0 : i32
    %c0_i32_0 = arith.constant 0 : i32
    %c0_i32_1 = arith.constant 0 : i32
    return %c0_i32, %c0_i32_0 : i32, i32
  }
  func.func @transform_4(%arg0: i32) -> (i32, i32) {
    %c0_i32 = arith.constant 0 : i32
    %c0_i32_0 = arith.constant 0 : i32
    %c0_i32_1 = arith.constant 0 : i32
    return %c0_i32, %c0_i32_0 : i32, i32
  }
  func.func @transform_5(%arg0: i32) -> (i32, i32) {
    %c0_i32 = arith.constant 0 : i32
    %c0_i32_0 = arith.constant 0 : i32
    %c0_i32_1 = arith.constant 0 : i32
    return %c0_i32, %c0_i32_0 : i32, i32
  }
  func.func @transform_6(%arg0: i32) -> (i32, i32) {
    %c0_i32 = arith.constant 0 : i32
    %c0_i32_0 = arith.constant 0 : i32
    %c0_i32_1 = arith.constant 0 : i32
    return %c0_i32, %c0_i32_0 : i32, i32
  }
  func.func @transform_7(%arg0: i32) -> (i32, i32) {
    %c0_i32 = arith.constant 0 : i32
    %c0_i32_0 = arith.constant 0 : i32
    %c0_i32_1 = arith.constant 0 : i32
    return %c0_i32, %c0_i32_0 : i32, i32
  }
  func.func @transform_8(%arg0: i32) -> (i32, i32) {
    %c0_i32 = arith.constant 0 : i32
    %c0_i32_0 = arith.constant 0 : i32
    return %arg0, %c0_i32 : i32, i32
  }
  func.func @transform_9(%arg0: i32) -> (i32, i32) {
    %c0_i32 = arith.constant 0 : i32
    %c0_i32_0 = arith.constant 0 : i32
    return %arg0, %c0_i32 : i32, i32
  }
}

module attributes {stable_mosaic.version = 11 : i64} {
  func.func @_sage_kernel(%arg0: i32, %arg1: memref<16x64xbf16, #tpu.memory_space<vmem>>, %arg2: memref<64x32xf32, #tpu.memory_space<vmem>>, %arg3: memref<16x32xf32, #tpu.memory_space<vmem>>, %arg4: memref<32x32xbf16, #tpu.memory_space<vmem>>, %arg5: memref<32x32xbf16, #tpu.memory_space<vmem>>, %arg6: memref<1x32xf32, #tpu.memory_space<vmem>>, %arg7: memref<16x32xf32, #tpu.memory_space<vmem>>) attributes {dimension_semantics = [#tpu.dimension_semantics<parallel>], iteration_bounds = array<i64: 4>, scalar_prefetch = 0 : i64, scratch_operands = 0 : i64, tpu.core_type = #tpu.core_type<tc>, window_params = [{transform_indices = @transform_0, window_bounds = array<i64: 16, 64>}, {pipeline_mode = #tpu.pipeline_mode<synchronous>, transform_indices = @transform_1, window_bounds = array<i64: 64, 32>}, {transform_indices = @transform_2, window_bounds = array<i64: 16, 32>}, {pipeline_mode = #tpu.pipeline_mode<synchronous>, transform_indices = @transform_3, window_bounds = array<i64: 32, 32>}, {pipeline_mode = #tpu.pipeline_mode<synchronous>, transform_indices = @transform_4, window_bounds = array<i64: 32, 32>}, {pipeline_mode = #tpu.pipeline_mode<synchronous>, transform_indices = @transform_5, window_bounds = array<i64: 1, 32>}, {transform_indices = @transform_6, window_bounds = array<i64: 16, 32>}]} {
    %c0 = arith.constant 0 : index
    %c0_0 = arith.constant 0 : index
    %0 = vector.load %arg2[%c0, %c0_0] : memref<64x32xf32, #tpu.memory_space<vmem>>, vector<64x32xf32>
    %c0_1 = arith.constant 0 : index
    %c0_2 = arith.constant 0 : index
    %1 = vector.load %arg3[%c0_1, %c0_2] : memref<16x32xf32, #tpu.memory_space<vmem>>, vector<16x32xf32>
    %cst = arith.constant 0.000000e+00 : f32
    %2 = vector.broadcast %cst : f32 to vector<64x32xf32>
    %3 = arith.cmpf oge, %0, %2 : vector<64x32xf32>
    %cst_3 = arith.constant 0.00999999977 : f32
    %4 = vector.broadcast %cst_3 : f32 to vector<64x32xf32>
    %5 = arith.mulf %4, %0 : vector<64x32xf32>
    %6 = arith.select %3, %0, %5 : vector<64x32xi1>, vector<64x32xf32>
    %cst_4 = arith.constant 0.000000e+00 : f32
    %7 = vector.broadcast %cst_4 : f32 to vector<16x32xf32>
    %8 = arith.cmpf oge, %1, %7 : vector<16x32xf32>
    %cst_5 = arith.constant 0.00999999977 : f32
    %9 = vector.broadcast %cst_5 : f32 to vector<16x32xf32>
    %10 = arith.mulf %9, %1 : vector<16x32xf32>
    %11 = arith.select %8, %1, %10 : vector<16x32xi1>, vector<16x32xf32>
    %c0_6 = arith.constant 0 : index
    %c0_7 = arith.constant 0 : index
    %12 = vector.load %arg1[%c0_6, %c0_7] : memref<16x64xbf16, #tpu.memory_space<vmem>>, vector<16x64xbf16>
    %13 = arith.extf %12 : vector<16x64xbf16> to vector<16x64xf32>
    %cst_8 = arith.constant dense<0.000000e+00> : vector<16xf32>
    %14 = vector.multi_reduction <add>, %13, %cst_8 [1] : vector<16x64xf32> to vector<16xf32>
    %15 = vector.shape_cast %14 : vector<16xf32> to vector<16x1xf32>
    %cst_9 = arith.constant 1.000000e+00 : f32
    %16 = vector.broadcast %cst_9 : f32 to vector<16x1xf32>
    %17 = arith.maximumf %15, %16 : vector<16x1xf32>
    %cst_10 = arith.constant 1.000000e+00 : f32
    %18 = vector.broadcast %cst_10 : f32 to vector<16x1xf32>
    %19 = arith.divf %18, %17 : vector<16x1xf32>
    %20 = arith.truncf %6 : vector<64x32xf32> to vector<64x32xbf16>
    %cst_11 = arith.constant dense<0.000000e+00> : vector<16x32xf32>
    %21 = tpu.matmul %12, %20, %cst_11 {dimension_numbers = #tpu.dot_dimension_numbers<[1], [0], [0], [1], [0, 0, 1, 1], [], []>} : vector<16x64xbf16>, vector<64x32xbf16>, vector<16x32xf32> -> vector<16x32xf32>
    %22 = vector.broadcast %19 : vector<16x1xf32> to vector<16x32xf32>
    %23 = arith.mulf %21, %22 : vector<16x32xf32>
    %24 = arith.truncf %23 : vector<16x32xf32> to vector<16x32xbf16>
    %c0_12 = arith.constant 0 : index
    %c0_13 = arith.constant 0 : index
    %25 = vector.load %arg4[%c0_12, %c0_13] : memref<32x32xbf16, #tpu.memory_space<vmem>>, vector<32x32xbf16>
    %cst_14 = arith.constant dense<0.000000e+00> : vector<16x32xf32>
    %26 = tpu.matmul %24, %25, %cst_14 {dimension_numbers = #tpu.dot_dimension_numbers<[1], [0], [0], [1], [0, 0, 1, 1], [], []>} : vector<16x32xbf16>, vector<32x32xbf16>, vector<16x32xf32> -> vector<16x32xf32>
    %27 = arith.truncf %11 : vector<16x32xf32> to vector<16x32xbf16>
    %c0_15 = arith.constant 0 : index
    %c0_16 = arith.constant 0 : index
    %28 = vector.load %arg5[%c0_15, %c0_16] : memref<32x32xbf16, #tpu.memory_space<vmem>>, vector<32x32xbf16>
    %cst_17 = arith.constant dense<0.000000e+00> : vector<16x32xf32>
    %29 = tpu.matmul %27, %28, %cst_17 {dimension_numbers = #tpu.dot_dimension_numbers<[1], [0], [0], [1], [0, 0, 1, 1], [], []>} : vector<16x32xbf16>, vector<32x32xbf16>, vector<16x32xf32> -> vector<16x32xf32>
    %30 = arith.addf %26, %29 : vector<16x32xf32>
    %c0_18 = arith.constant 0 : index
    %c0_19 = arith.constant 0 : index
    %31 = vector.load %arg6[%c0_18, %c0_19] : memref<1x32xf32, #tpu.memory_space<vmem>>, vector<1x32xf32>
    %32 = vector.broadcast %31 : vector<1x32xf32> to vector<16x32xf32>
    %33 = arith.addf %30, %32 : vector<16x32xf32>
    %c0_20 = arith.constant 0 : index
    %c0_21 = arith.constant 0 : index
    %34 = vector.load %arg7[%c0_20, %c0_21] : memref<16x32xf32, #tpu.memory_space<vmem>>, vector<16x32xf32>
    tpu.vector_store %arg7[%c0_20, %c0_21], %33 {strides = array<i32>} : memref<16x32xf32, #tpu.memory_space<vmem>>, vector<16x32xf32>,
    return
  }
  func.func @transform_0(%arg0: i32) -> (i32, i32) {
    %c0_i32 = arith.constant 0 : i32
    %c0_i32_0 = arith.constant 0 : i32
    return %arg0, %c0_i32 : i32, i32
  }
  func.func @transform_1(%arg0: i32) -> (i32, i32) {
    %c0_i32 = arith.constant 0 : i32
    %c0_i32_0 = arith.constant 0 : i32
    %c0_i32_1 = arith.constant 0 : i32
    return %c0_i32, %c0_i32_0 : i32, i32
  }
  func.func @transform_2(%arg0: i32) -> (i32, i32) {
    %c0_i32 = arith.constant 0 : i32
    %c0_i32_0 = arith.constant 0 : i32
    return %arg0, %c0_i32 : i32, i32
  }
  func.func @transform_3(%arg0: i32) -> (i32, i32) {
    %c0_i32 = arith.constant 0 : i32
    %c0_i32_0 = arith.constant 0 : i32
    %c0_i32_1 = arith.constant 0 : i32
    return %c0_i32, %c0_i32_0 : i32, i32
  }
  func.func @transform_4(%arg0: i32) -> (i32, i32) {
    %c0_i32 = arith.constant 0 : i32
    %c0_i32_0 = arith.constant 0 : i32
    %c0_i32_1 = arith.constant 0 : i32
    return %c0_i32, %c0_i32_0 : i32, i32
  }
  func.func @transform_5(%arg0: i32) -> (i32, i32) {
    %c0_i32 = arith.constant 0 : i32
    %c0_i32_0 = arith.constant 0 : i32
    %c0_i32_1 = arith.constant 0 : i32
    return %c0_i32, %c0_i32_0 : i32, i32
  }
  func.func @transform_6(%arg0: i32) -> (i32, i32) {
    %c0_i32 = arith.constant 0 : i32
    %c0_i32_0 = arith.constant 0 : i32
    return %arg0, %c0_i32 : i32, i32
  }
}

</mosaic_0001>

<llo_original>
// kernel: student_forward.3
$region0: #{student_forward.3}
  #allocation0 [shape = 'u32[]', space=smem, size = 0x4, offset = 0x4, fixed_abs, tag = 'smem constant byte address 0x4 - core index']
  #allocation1 [shape = 'u32[144,128]{1,0:T(1,128)}', space=vmem, size = 0x12000, scoped, tag = 'internal scratch']
  %s0 = inlined_call_operand.vmem [shape: bf16[64,64], index: 0, kind: input, shape index: {}]
  %s1 = inlined_call_operand.vmem [shape: f32[64,8], index: 1, kind: input, shape index: {}, may-alias: {1,2}]
  %s2 = inlined_call_operand.vmem [shape: f32[64,8], index: 2, kind: input, shape index: {}, may-alias: {1,2}]
  %s3 = inlined_call_operand.vmem [shape: bf16[8,32], index: 3, kind: input, shape index: {}]
  %s4 = inlined_call_operand.vmem [shape: bf16[8,32], index: 4, kind: input, shape index: {}]
  %s5 = inlined_call_operand.vmem [shape: f32[1,32], index: 5, kind: input, shape index: {}]
  %s6 = inlined_call_operand.vmem [shape: f32[64,32], index: 6, kind: output, shape index: {}]
  %s7 = sld [smem:[#allocation0]]
  $region57: #{student_forward.3} parent=0
    _
  %s9 = ssub.s32 1, %s7
  %s10 = scalar_select 0, %s9, %s7
  loop: start=0, step=1, limit=6
  $region2: #{student_forward.3} parent=0 // loop_pre_header
    _
  $region3: #{student_forward.3} parent=0 // loop_header
    %s12 = sphi 0, %s16
    %p13 = scmp.ge.s32.totalorder %s12, 6
    %s22 = sphi 0, %s24
    %s25 = sphi 0, %s22
    %s26 = sphi 0, %s25
    %s42 = sphi 0, %s26
    %s46 = sphi 0, %s46
    %s48 = sphi 0, %s46
    %s49 = sphi 0, %s48
    %s63 = sphi 0, %s49
    %s69 = sphi 0, %s71
    %s72 = sphi 0, %s69
    %s73 = sphi 0, %s72
    %s89 = sphi 0, %s73
    %s93 = sphi 0, %s93
    %s95 = sphi 0, %s93
    %s96 = sphi 0, %s95
    %s110 = sphi 0, %s96
    %s114 = sphi 0, %s114
    %s116 = sphi 0, %s114
    %s117 = sphi 0, %s116
    %s131 = sphi 0, %s117
    %s135 = sphi 0, %s135
    %s137 = sphi 0, %s135
    %s138 = sphi 0, %s137
    %s152 = sphi 0, %s138
    %s158 = sphi 0, %s160
    %s161 = sphi 0, %s158
    %s162 = sphi 0, %s161
    %s178 = sphi 0, %s162
  $region4: #{student_forward.3} parent=0 // loop_header_branch
    %15 = sbr.rel (%p13) target = $region8
  $region5: #{student_forward.3} parent=0 // loop_body
    %s17 = ssub.s32 %s12, 1
    %s18 = ssub.s32 %s12, 2
    %s19 = sadd.s32 %s12, 1
    %s20 = ssub.s32 %s12, %s19
    %p21 = scmp.eq.s32.totalorder %s20, 0
    %s23 = sadd.s32 %s22, 1
    %s24 = scalar_select %p21, %s22, %s23
    %p27 = pneg %p21
    %p28 = scmp.eq.s32.totalorder %s12, 3
    %p29 = por %p27, %p28
    %p30 = scmp.ne.s32.totalorder %s22, %s25
    %p31 = scmp.eq.s32.totalorder %s12, 0
    %p32 = por %p30, %p31
    %p33 = scmp.ne.s32.totalorder %s22, %s25
    %p34 = scmp.eq.s32.totalorder %s17, 3
    %p35 = por %p33, %p34
    %p36 = scmp.ne.s32.totalorder %s25, %s26
    %p37 = scmp.eq.s32.totalorder %s17, 0
    %p38 = por %p36, %p37
    %p39 = scmp.ne.s32.totalorder %s25, %s26
    %p40 = scmp.eq.s32.totalorder %s18, 3
    %p41 = por %p39, %p40
    %p43 = scmp.ne.s32.totalorder %s26, %s42
    %p44 = scmp.eq.s32.totalorder %s18, 0
    %p45 = por %p43, %p44
    %s47 = sadd.s32 %s46, 1
    %p50 = scmp.eq.s32.totalorder %s12, 3
    %p51 = scmp.ne.s32.totalorder %s46, %s48
    %p52 = scmp.eq.s32.totalorder %s12, 0
    %p53 = por %p51, %p52
    %p54 = scmp.ne.s32.totalorder %s46, %s48
    %p55 = scmp.eq.s32.totalorder %s17, 3
    %p56 = por %p54, %p55
    %p57 = scmp.ne.s32.totalorder %s48, %s49
    %p58 = scmp.eq.s32.totalorder %s17, 0
    %p59 = por %p57, %p58
    %p60 = scmp.ne.s32.totalorder %s48, %s49
    %p61 = scmp.eq.s32.totalorder %s18, 3
    %p62 = por %p60, %p61
    %p64 = scmp.ne.s32.totalorder %s49, %s63
    %p65 = scmp.eq.s32.totalorder %s18, 0
    %p66 = por %p64, %p65
    %s67 = ssub.s32 %s12, %s19
    %p68 = scmp.eq.s32.totalorder %s67, 0
    %s70 = sadd.s32 %s69, 1
    %s71 = scalar_select %p68, %s69, %s70
    %p74 = pneg %p68
    %p75 = scmp.eq.s32.totalorder %s12, 3
    %p76 = por %p74, %p75
    %p77 = scmp.ne.s32.totalorder %s69, %s72
    %p78 = scmp.eq.s32.totalorder %s12, 0
    %p79 = por %p77, %p78
    %p80 = scmp.ne.s32.totalorder %s69, %s72
    %p81 = scmp.eq.s32.totalorder %s17, 3
    %p82 = por %p80, %p81
    %p83 = scmp.ne.s32.totalorder %s72, %s73
    %p84 = scmp.eq.s32.totalorder %s17, 0
    %p85 = por %p83, %p84
    %p86 = scmp.ne.s32.totalorder %s72, %s73
    %p87 = scmp.eq.s32.totalorder %s18, 3
    %p88 = por %p86, %p87
    %p90 = scmp.ne.s32.totalorder %s73, %s89
    %p91 = scmp.eq.s32.totalorder %s18, 0
    %p92 = por %p90, %p91
    %s94 = sadd.s32 %s93, 1
    %p97 = scmp.eq.s32.totalorder %s12, 3
    %p98 = scmp.ne.s32.totalorder %s93, %s95
    %p99 = scmp.eq.s32.totalorder %s12, 0
    %p100 = por %p98, %p99
    %p101 = scmp.ne.s32.totalorder %s93, %s95
    %p102 = scmp.eq.s32.totalorder %s17, 3
    %p103 = por %p101, %p102
    %p104 = scmp.ne.s32.totalorder %s95, %s96
    %p105 = scmp.eq.s32.totalorder %s17, 0
    %p106 = por %p104, %p105
    %p107 = scmp.ne.s32.totalorder %s95, %s96
    %p108 = scmp.eq.s32.totalorder %s18, 3
    %p109 = por %p107, %p108
    %p111 = scmp.ne.s32.totalorder %s96, %s110
    %p112 = scmp.eq.s32.totalorder %s18, 0
    %p113 = por %p111, %p112
    %s115 = sadd.s32 %s114, 1
    %p118 = scmp.eq.s32.totalorder %s12, 3
    %p119 = scmp.ne.s32.totalorder %s114, %s116
    %p120 = scmp.eq.s32.totalorder %s12, 0
    %p121 = por %p119, %p120
    %p122 = scmp.ne.s32.totalorder %s114, %s116
    %p123 = scmp.eq.s32.totalorder %s17, 3
    %p124 = por %p122, %p123
    %p125 = scmp.ne.s32.totalorder %s116, %s117
    %p126 = scmp.eq.s32.totalorder %s17, 0
    %p127 = por %p125, %p126
    %p128 = scmp.ne.s32.totalorder %s116, %s117
    %p129 = scmp.eq.s32.totalorder %s18, 3
    %p130 = por %p128, %p129
    %p132 = scmp.ne.s32.totalorder %s117, %s131
    %p133 = scmp.eq.s32.totalorder %s18, 0
    %p134 = por %p132, %p133
    %s136 = sadd.s32 %s135, 1
    %p139 = scmp.eq.s32.totalorder %s12, 3
    %p140 = scmp.ne.s32.totalorder %s135, %s137
    %p141 = scmp.eq.s32.totalorder %s12, 0
    %p142 = por %p140, %p141
    %p143 = scmp.ne.s32.totalorder %s135, %s137
    %p144 = scmp.eq.s32.totalorder %s17, 3
    %p145 = por %p143, %p144
    %p146 = scmp.ne.s32.totalorder %s137, %s138
    %p147 = scmp.eq.s32.totalorder %s17, 0
    %p148 = por %p146, %p147
    %p149 = scmp.ne.s32.totalorder %s137, %s138
    %p150 = scmp.eq.s32.totalorder %s18, 3
    %p151 = por %p149, %p150
    %p153 = scmp.ne.s32.totalorder %s138, %s152
    %p154 = scmp.eq.s32.totalorder %s18, 0
    %p155 = por %p153, %p154
    %s156 = ssub.s32 %s12, %s19
    %p157 = scmp.eq.s32.totalorder %s156, 0
    %s159 = sadd.s32 %s158, 1
    %s160 = scalar_select %p157, %s158, %s159
    %p163 = pneg %p157
    %p164 = scmp.eq.s32.totalorder %s12, 3
    %p165 = por %p163, %p164
    %p166 = scmp.ne.s32.totalorder %s158, %s161
    %p167 = scmp.eq.s32.totalorder %s12, 0
    %p168 = por %p166, %p167
    %p169 = scmp.ne.s32.totalorder %s158, %s161
    %p170 = scmp.eq.s32.totalorder %s17, 3
    %p171 = por %p169, %p170
    %p172 = scmp.ne.s32.totalorder %s161, %s162
    %p173 = scmp.eq.s32.totalorder %s17, 0
    %p174 = por %p172, %p173
    %p175 = scmp.ne.s32.totalorder %s161, %s162
    %p176 = scmp.eq.s32.totalorder %s18, 3
    %p177 = por %p175, %p176
    %p179 = scmp.ne.s32.totalorder %s162, %s178
    %p180 = scmp.eq.s32.totalorder %s18, 0
    %p181 = por %p179, %p180
    %p182 = scmp.le.s32.totalorder 1, %s12
    %p183 = scmp.lt.s32.totalorder %s12, 5
    %p184 = pnand %p182, %p183
    %p185 = pneg %p184
    // Predicated region
    $region9: #{student_forward.3} parent=5 // pred_check
      _
    $region10: #{student_forward.3} parent=5 // pred_check_branch
      %187 = sbr.rel (%p184) target = $region12
    $region11: #{student_forward.3} parent=5 // pred_region
      %s188 = ssub.s32 %s12, 1
      // Predicated region
      $region13: #{student_forward.3} parent=11 // pred_check
        %p189 = pneg %p59
      $region14: #{student_forward.3} parent=11 // pred_check_branch
        %191 = sbr.rel (%p189) target = $region16
      $region15: #{student_forward.3} parent=11 // pred_region
        _
      $region16: #{student_forward.3} parent=11 // pred_fallthru
        _
      // Predicated region
      $region17: #{student_forward.3} parent=11 // pred_check
        %p192 = pneg %p106
      $region18: #{student_forward.3} parent=11 // pred_check_branch
        %194 = sbr.rel (%p192) target = $region20
      $region19: #{student_forward.3} parent=11 // pred_region
        _
      $region20: #{student_forward.3} parent=11 // pred_fallthru
        _
      // Predicated region
      $region21: #{student_forward.3} parent=11 // pred_check
        %p195 = pneg %p127
      $region22: #{student_forward.3} parent=11 // pred_check_branch
        %197 = sbr.rel (%p195) target = $region24
      $region23: #{student_forward.3} parent=11 // pred_region
        _
      $region24: #{student_forward.3} parent=11 // pred_fallthru
        _
      // Predicated region
      $region25: #{student_forward.3} parent=11 // pred_check
        %p198 = pneg %p148
      $region26: #{student_forward.3} parent=11 // pred_check_branch
        %200 = sbr.rel (%p198) target = $region28
      $region27: #{student_forward.3} parent=11 // pred_region
        _
      $region28: #{student_forward.3} parent=11 // pred_fallthru
        _
    $region12: #{student_forward.3} parent=5 // pred_fallthru
      _
    %p201 = scmp.lt.s32.totalorder %s12, 4
    // Predicated region
    $region29: #{student_forward.3} parent=5 // pred_check
      %p202 = pneg %p201
    $region30: #{student_forward.3} parent=5 // pred_check_branch
      %204 = sbr.rel (%p202) target = $region32
    $region31: #{student_forward.3} parent=5 // pred_region
      // Predicated region
      $region33: #{student_forward.3} parent=31 // pred_check
        %p205 = pneg %p32
      $region34: #{student_forward.3} parent=31 // pred_check_branch
        %207 = sbr.rel (%p205) target = $region36
      $region35: #{student_forward.3} parent=31 // pred_region
        %s208 = smul.u32 2, %s12
        %p209 = scmp.lt.s32.totalorder %s208, 7
        %s210 = scalar_select %p209, %s208, 7
        %s211 = smul.addr %s210, 4
        %s212 = scalar_lea.vmem %s0, %s211
        %s213 = smul.u32 2, %s12
      $region36: #{student_forward.3} parent=31 // pred_fallthru
        _
      // Predicated region
      $region37: #{student_forward.3} parent=31 // pred_check
        %p214 = pneg %p79
      $region38: #{student_forward.3} parent=31 // pred_check_branch
        %216 = sbr.rel (%p214) target = $region40
      $region39: #{student_forward.3} parent=31 // pred_region
        %s217 = smul.u32 2, %s12
        %p218 = scmp.lt.s32.totalorder %s217, 7
        %s219 = scalar_select %p218, %s217, 7
        %s220 = smul.addr %s219, 8
        %s221 = scalar_lea.vmem %s2, %s220
        %s222 = smul.u32 2, %s12
      $region40: #{student_forward.3} parent=31 // pred_fallthru
        _
    $region32: #{student_forward.3} parent=5 // pred_fallthru
      _
    %p223 = scmp.le.s32.totalorder 1, %s12
    %p224 = scmp.lt.s32.totalorder %s12, 5
    %p225 = pnand %p223, %p224
    %p226 = pneg %p225
    // Predicated region
    $region41: #{student_forward.3} parent=5 // pred_check
      _
    $region42: #{student_forward.3} parent=5 // pred_check_branch
      %228 = sbr.rel (%p225) target = $region44
    $region43: #{student_forward.3} parent=5 // pred_region
      %s229 = ssub.s32 %s12, 1
      %s230 = smul.u32 2, %s17
      %p231 = scmp.lt.s32.totalorder %s230, 7
      %s232 = scalar_select %p231, %s230, 7
      %s233 = smul.addr %s232, 4
      %s234 = scalar_lea.vmem %s0, %s233
      %p235 = pneg %p38
      %p236 = pneg %p35
      %p237 = pneg %p59
      %p238 = pneg %p56
      %s239 = smul.u32 2, %s17
      %p240 = scmp.lt.s32.totalorder %s239, 7
      %s241 = scalar_select %p240, %s239, 7
      %s242 = smul.addr %s241, 8
      %s243 = scalar_lea.vmem %s2, %s242
      %p244 = pneg %p85
      %p245 = pneg %p82
      %p246 = pneg %p106
      %p247 = pneg %p103
      %p248 = pneg %p127
      %p249 = pneg %p124
      %p250 = pneg %p148
      %p251 = pneg %p145
      %p252 = pneg %p174
      %p253 = pneg %p171
      %s254 = smul.u32 2, %s17
      %p255 = scmp.lt.s32.totalorder %s254, 7
      %s256 = scalar_select %p255, %s254, 7
      %s257 = smul.addr %s256, 8
      %s258 = scalar_lea.vmem %s6, %s257
      %s259 = smul.u32 2, %s17
      %p260 = scmp.lt.s32.totalorder %s259, 7
      %s261 = scalar_select %p260, %s259, 7
      %s262 = smul.addr %s261, 4
      %s263 = scalar_lea.vmem %s0, %s262
      %s264 = smul.u32 2, %s17
      %s265 = smul.u32 2, %s17
      %p266 = scmp.lt.s32.totalorder %s265, 7
      %s267 = scalar_select %p266, %s265, 7
      %s268 = smul.addr %s267, 8
      %s269 = scalar_lea.vmem %s2, %s268
      %s270 = smul.u32 2, %s17
      %s271 = smul.u32 2, %s17
      %p272 = scmp.lt.s32.totalorder %s271, 7
      %s273 = scalar_select %p272, %s271, 7
      %s274 = smul.addr %s273, 8
      %s275 = scalar_lea.vmem %s6, %s274
      %s276 = smul.u32 2, %s17
      %v278 = vld [vmem:[%s1] sm:$0xff]
      %v279 = vld [vmem:[%s1 + $0x8] sm:$0xff]
      %v280 = vld [vmem:[%s1 + $0x10] sm:$0xff]
      %v281 = vld [vmem:[%s1 + $0x18] sm:$0xff]
      %v282 = vld [vmem:[%s1 + $0x20] sm:$0xff]
      %v283 = vld [vmem:[%s1 + $0x28] sm:$0xff]
      %v284 = vld [vmem:[%s1 + $0x30] sm:$0xff]
      %v285 = vld [vmem:[%s1 + $0x38] sm:$0xff]
      %v286 = vld [vmem:[%s269] sm:$0xff]
      %v287 = vld [vmem:[%s269 + $0x8] sm:$0xff]
      %vm288 = vcmp.ne.f32.partialorder %v278, %v278
      %vm289 = vcmp.ne.f32.partialorder %v279, %v279
      %vm290 = vcmp.ne.f32.partialorder %v280, %v280
      %vm291 = vcmp.ne.f32.partialorder %v281, %v281
      %vm292 = vcmp.ne.f32.partialorder %v282, %v282
      %vm293 = vcmp.ne.f32.partialorder %v283, %v283
      %vm294 = vcmp.ne.f32.partialorder %v284, %v284
      %vm295 = vcmp.ne.f32.partialorder %v285, %v285
      %v296 = vsel %vm288, 0.0, %v278
      %v297 = vsel %vm289, 0.0, %v279
      %v298 = vsel %vm290, 0.0, %v280
      %v299 = vsel %vm291, 0.0, %v281
      %v300 = vsel %vm292, 0.0, %v282
      %v301 = vsel %vm293, 0.0, %v283
      %v302 = vsel %vm294, 0.0, %v284
      %v303 = vsel %vm295, 0.0, %v285
      %vm304 = vcmp.ne.f32.partialorder %v286, %v286
      %vm305 = vcmp.ne.f32.partialorder %v287, %v287
      %v306 = vsel %vm304, 0.0, %v286
      %v307 = vsel %vm305, 0.0, %v287
      %v308 = vld [vmem:[%s263] sm:$0xf]
      %v309 = vld [vmem:[%s263 + $0x4] sm:$0xf]
      %v310 = vunpack.c.l.bf16 %v308
      %v311 = vunpack.c.l.bf16 %v309
      %vm312 = vcmask 523264
      %v313 = vsel %vm312, %v310, 0.0
      %314 = vadd.xlane.f32.xlu0 %v313
      %v315 = vpop.xlane.xlu0 %314
      %v316 = vsel %vm312, %v311, 0.0
      %317 = vadd.xlane.f32.xlu0 %v316
      %v318 = vpop.xlane.xlu0 %317
      %v319 = vmax.f32 %v315, 1.0
      %v320 = vmax.f32 %v318, 1.0
      %v321 = vrcp.pop %v319
      %v322 = vmul.f32 1.0, %v321
      %v323 = vrcp.pop %v320
      %v324 = vmul.f32 1.0, %v323
      %v325 = vpack.c.bf16 %v297, %v296
      %v326 = vpack.c.bf16 %v299, %v298
      %v327 = vpack.c.bf16 %v301, %v300
      %v328 = vpack.c.bf16 %v303, %v302
      %v331 = vunpack.c.l.b16 %v308
      %v332 = vunpack.c.l.b16 %v309
      %v333 = vpack.c.b16 %v332, %v331
      %v335 = vsel %vm312, %v333, 0
      %337 = vmatprep.subr.bf16.mxu0 0
      %338 = vmatpush1.bf16.msra.mxu0 0
      %339 = vmatprep.subr.bf16.mxu0 0
      %340 = vmatpush1.bf16.msra.mxu0 0
      %341 = vmatprep.subr.bf16.mxu0 0
      %342 = vmatpush1.bf16.msra.mxu0 0
      %343 = vmatprep.subr.bf16.mxu0 0
      %344 = vmatpush1.bf16.msra.mxu0 0
      %345 = vmatprep.subr.bf16.mxu0 0
      %346 = vmatpush1.bf16.msra.mxu0 %v328
      %347 = vmatprep.subr.bf16.mxu0 0
      %348 = vmatpush1.bf16.msra.mxu0 %v327
      %349 = vmatprep.subr.bf16.mxu0 0
      %350 = vmatpush1.bf16.msra.mxu0 %v326
      %351 = vmatprep.subr.bf16.mxu0 0
      %352 = vmatpush1.bf16.msra.mxu0 %v325
      %353 = vmatprep.subr.bf16.mxu0 0
      %354 = vmatpush2.bf16.msra.mxu0 0
      %355 = vmatprep.subr.bf16.mxu0 0
      %356 = vmatpush2.bf16.msra.mxu0 0
      %357 = vmatprep.subr.bf16.mxu0 0
      %358 = vmatpush2.bf16.msra.mxu0 0
      %359 = vmatprep.subr.bf16.mxu0 0
      %360 = vmatpush2.bf16.msra.mxu0 0
      %361 = vmatprep.subr.bf16.mxu0 0
      %362 = vmatpush2.bf16.msra.mxu0 0
      %363 = vmatprep.subr.bf16.mxu0 0
      %364 = vmatpush2.bf16.msra.mxu0 0
      %365 = vmatprep.subr.bf16.mxu0 0
      %366 = vmatpush2.bf16.msra.mxu0 0
      %367 = vmatprep.subr.bf16.mxu0 0
      %368 = vmatpush2.bf16.msra.mxu0 0
      %369 = vmatprep.mubr.bf16.mxu0 0
      %370 = vmatmul.mubr.bf16.gmra.mxu0 %v335
      %v371 = vpop.f32.mrf.mxu0
      %v372 = vadd.f32 0.0, %v371
      %v373 = vpop.f32.mrf.mxu0
      %v374 = vpop.f32.mrf.mxu0
      %v375 = vadd.f32 0.0, %v374
      %v376 = vpop.f32.mrf.mxu0
      %377 = vdwg.mxu0
      %v378 = vmul.f32 %v372, %v322
      %v379 = vmul.f32 %v375, %v324
      %v380 = vpack.c.bf16 %v379, %v378
      %v381 = vld [vmem:[%s3] sm:$0xf]
      %v382 = vpack.c.bf16 %v307, %v306
      %v383 = vld [vmem:[%s4] sm:$0xf]
      %vm384 = vcmask 64512
      %v386 = vsel %vm384, %v382, 0
      %vm388 = vcmask 1043456
      %v390 = vsel %vm388, %v383, 0
      %392 = vmatprep.subr.bf16.mxu0 0
      %393 = vmatpush1.bf16.msra.mxu0 0
      %394 = vmatprep.subr.bf16.mxu0 0
      %395 = vmatpush1.bf16.msra.mxu0 0
      %396 = vmatprep.subr.bf16.mxu0 0
      %397 = vmatpush1.bf16.msra.mxu0 0
      %398 = vmatprep.subr.bf16.mxu0 0
      %399 = vmatpush1.bf16.msra.mxu0 0
      %400 = vmatprep.subr.bf16.mxu0 0
      %401 = vmatpush1.bf16.msra.mxu0 0
      %402 = vmatprep.subr.bf16.mxu0 0
      %403 = vmatpush1.bf16.msra.mxu0 0
      %404 = vmatprep.subr.bf16.mxu0 0
      %405 = vmatpush1.bf16.msra.mxu0 0
      %406 = vmatprep.subr.bf16.mxu0 0
      %407 = vmatpush1.bf16.msra.mxu0 %v390
      %408 = vmatprep.subr.bf16.mxu0 0
      %409 = vmatpush2.bf16.msra.mxu0 0
      %410 = vmatprep.subr.bf16.mxu0 0
      %411 = vmatpush2.bf16.msra.mxu0 0
      %412 = vmatprep.subr.bf16.mxu0 0
      %413 = vmatpush2.bf16.msra.mxu0 0
      %414 = vmatprep.subr.bf16.mxu0 0
      %415 = vmatpush2.bf16.msra.mxu0 0
      %416 = vmatprep.subr.bf16.mxu0 0
      %417 = vmatpush2.bf16.msra.mxu0 0
      %418 = vmatprep.subr.bf16.mxu0 0
      %419 = vmatpush2.bf16.msra.mxu0 0
      %420 = vmatprep.subr.bf16.mxu0 0
      %421 = vmatpush2.bf16.msra.mxu0 0
      %422 = vmatprep.subr.bf16.mxu0 0
      %423 = vmatpush2.bf16.msra.mxu0 0
      %424 = vmatprep.mubr.bf16.mxu0 0
      %425 = vmatmul.mubr.bf16.gmra.mxu0 %v386
      %v426 = vpop.f32.mrf.mxu0
      %v427 = vadd.f32 0.0, %v426
      %v428 = vpop.f32.mrf.mxu0
      %v429 = vpop.f32.mrf.mxu0
      %v430 = vadd.f32 0.0, %v429
      %v431 = vpop.f32.mrf.mxu0
      %432 = vdwg.mxu0
      %v434 = vsel %vm384, %v380, 0
      %v437 = vsel %vm388, %v381, 0
      %439 = vmatprep.subr.bf16.mxu0 0
      %440 = vmatpush1.bf16.msra.mxu0 0
      %441 = vmatprep.subr.bf16.mxu0 0
      %442 = vmatpush1.bf16.msra.mxu0 0
      %443 = vmatprep.subr.bf16.mxu0 0
      %444 = vmatpush1.bf16.msra.mxu0 0
      %445 = vmatprep.subr.bf16.mxu0 0
      %446 = vmatpush1.bf16.msra.mxu0 0
      %447 = vmatprep.subr.bf16.mxu0 0
      %448 = vmatpush1.bf16.msra.mxu0 0
      %449 = vmatprep.subr.bf16.mxu0 0
      %450 = vmatpush1.bf16.msra.mxu0 0
      %451 = vmatprep.subr.bf16.mxu0 0
      %452 = vmatpush1.bf16.msra.mxu0 0
      %453 = vmatprep.subr.bf16.mxu0 0
      %454 = vmatpush1.bf16.msra.mxu0 %v437
      %455 = vmatprep.subr.bf16.mxu0 0
      %456 = vmatpush2.bf16.msra.mxu0 0
      %457 = vmatprep.subr.bf16.mxu0 0
      %458 = vmatpush2.bf16.msra.mxu0 0
      %459 = vmatprep.subr.bf16.mxu0 0
      %460 = vmatpush2.bf16.msra.mxu0 0
      %461 = vmatprep.subr.bf16.mxu0 0
      %462 = vmatpush2.bf16.msra.mxu0 0
      %463 = vmatprep.subr.bf16.mxu0 0
      %464 = vmatpush2.bf16.msra.mxu0 0
      %465 = vmatprep.subr.bf16.mxu0 0
      %466 = vmatpush2.bf16.msra.mxu0 0
      %467 = vmatprep.subr.bf16.mxu0 0
      %468 = vmatpush2.bf16.msra.mxu0 0
      %469 = vmatprep.subr.bf16.mxu0 0
      %470 = vmatpush2.bf16.msra.mxu0 0
      %471 = vmatprep.mubr.bf16.mxu0 0
      %472 = vmatmul.mubr.bf16.gmra.mxu0 %v434
      %v473 = vpop.f32.mrf.mxu0
      %v474 = vadd.f32 %v427, %v473
      %v475 = vpop.f32.mrf.mxu0
      %v476 = vpop.f32.mrf.mxu0
      %v477 = vadd.f32 %v430, %v476
      %v478 = vpop.f32.mrf.mxu0
      %479 = vdwg.mxu0
      %v480 = vld [vmem:[%s5] sm:$0x1]
      %v482 = vlaneseq
      %v483 = vshrl.u32 %v482, 7
      %v484 = vsub.s32 0, %v483
      %v485 = vrot.slane %v480, %v484
      %v487 = vadd.f32 %v474, %v485
      %v488 = vadd.f32 %v477, %v485
      %vm489 = vcmask 261120
      %490 = vst.msk [vmem:[%s275] sm:$0xff] %vm489, %v487
      %491 = vst.msk [vmem:[%s275 + $0x8] sm:$0xff] %vm489, %v488
      %s492 = smul.u32 2, %s17
      %p493 = scmp.lt.s32.totalorder %s492, 7
      %s494 = scalar_select %p493, %s492, 7
      %s495 = smul.addr %s494, 8
      %s496 = scalar_lea.vmem %s6, %s495
      // Predicated region
      $region45: #{student_forward.3} parent=43 // pred_check
        %p497 = pneg %p171
      $region46: #{student_forward.3} parent=43 // pred_check_branch
        %499 = sbr.rel (%p497) target = $region48
      $region47: #{student_forward.3} parent=43 // pred_region
        %s500 = smul.u32 2, %s17
      $region48: #{student_forward.3} parent=43 // pred_fallthru
        _
    $region44: #{student_forward.3} parent=5 // pred_fallthru
      _
    %p501 = scmp.le.s32.totalorder 2, %s12
    // Predicated region
    $region49: #{student_forward.3} parent=5 // pred_check
      %p502 = pneg %p501
    $region50: #{student_forward.3} parent=5 // pred_check_branch
      %504 = sbr.rel (%p502) target = $region52
    $region51: #{student_forward.3} parent=5 // pred_region
      %s505 = ssub.s32 %s12, 2
      // Predicated region
      $region53: #{student_forward.3} parent=51 // pred_check
        %p506 = pneg %p177
      $region54: #{student_forward.3} parent=51 // pred_check_branch
        %508 = sbr.rel (%p506) target = $region56
      $region55: #{student_forward.3} parent=51 // pred_region
        %s509 = smul.u32 2, %s18
        %p510 = scmp.lt.s32.totalorder %s509, 7
        %s511 = scalar_select %p510, %s509, 7
        %s512 = smul.addr %s511, 8
        %s513 = scalar_lea.vmem %s6, %s512
      $region56: #{student_forward.3} parent=51 // pred_fallthru
        _
    $region52: #{student_forward.3} parent=5 // pred_fallthru
      _
  $region6: #{student_forward.3} parent=0 // loop_footer
    %s16 = sadd.s32 1, %s12
  $region7: #{student_forward.3} parent=0 // loop_footer_branch
    %11 = sbr.rel target = $region3
  $region8: #{student_forward.3} parent=0 // loop_exit
    _

// kernel: student_forward.5
$region0: #{student_forward.5}
  #allocation0 [shape = 'u32[]', space=smem, size = 0x4, offset = 0x4, fixed_abs, tag = 'smem constant byte address 0x4 - core index']
  #allocation1 [shape = 'u32[144,128]{1,0:T(1,128)}', space=vmem, size = 0x12000, scoped, tag = 'internal scratch']
  #allocation2 [shape = 'f32[1,1]{1,0:T(1,128)S(1)}', space=vmem, size = 0x200, scoped, tag = 'scoped memory for student_forward.5']
  %s0 = inlined_call_operand.vmem [shape: bf16[64,64], index: 0, kind: input, shape index: {}]
  %s1 = inlined_call_operand.vmem [shape: f32[64,32], index: 1, kind: input, shape index: {}, may-alias: {1,2}]
  %s2 = inlined_call_operand.vmem [shape: f32[64,32], index: 2, kind: input, shape index: {}, may-alias: {1,2}]
  %s3 = inlined_call_operand.vmem [shape: bf16[32,16], index: 3, kind: input, shape index: {}]
  %s4 = inlined_call_operand.vmem [shape: bf16[32,16], index: 4, kind: input, shape index: {}]
  %s5 = inlined_call_operand.vmem [shape: f32[1,16], index: 5, kind: input, shape index: {}]
  %s6 = inlined_call_operand.vmem [shape: f32[1,16], index: 6, kind: input, shape index: {}]
  %s7 = inlined_call_operand.<no memory space> [shape: f32[1,1], index: 7, kind: input, shape index: {}]
  %s8 = inlined_call_operand.vmem [shape: f32[64,16], index: 8, kind: output, shape index: {0}]
  %s9 = inlined_call_operand.vmem [shape: f32[64,1], index: 9, kind: output, shape index: {1}]
  %10 = xla_tuple %s8, %s9
  %s11 = sld [smem:[#allocation0]]
  $region73: #{student_forward.5} parent=0
    _
  %s13 = ssub.s32 1, %s11
  %s14 = scalar_select 0, %s13, %s11
  %v15 = vstv %s7
  %16 = vst [vmem:[#allocation2] sm:$0x1] %v15
  loop: start=0, step=1, limit=6
  $region2: #{student_forward.5} parent=0 // loop_pre_header
    _
  $region3: #{student_forward.5} parent=0 // loop_header
    %s18 = sphi 0, %s22
    %p19 = scmp.ge.s32.totalorder %s18, 6
    %s28 = sphi 0, %s30
    %s31 = sphi 0, %s28
    %s32 = sphi 0, %s31
    %s48 = sphi 0, %s32
    %s52 = sphi 0, %s52
    %s54 = sphi 0, %s52
    %s55 = sphi 0, %s54
    %s69 = sphi 0, %s55
    %s75 = sphi 0, %s77
    %s78 = sphi 0, %s75
    %s79 = sphi 0, %s78
    %s95 = sphi 0, %s79
    %s99 = sphi 0, %s99
    %s101 = sphi 0, %s99
    %s102 = sphi 0, %s101
    %s116 = sphi 0, %s102
    %s120 = sphi 0, %s120
    %s122 = sphi 0, %s120
    %s123 = sphi 0, %s122
    %s137 = sphi 0, %s123
    %s141 = sphi 0, %s141
    %s143 = sphi 0, %s141
    %s144 = sphi 0, %s143
    %s158 = sphi 0, %s144
    %s162 = sphi 0, %s162
    %s164 = sphi 0, %s162
    %s165 = sphi 0, %s164
    %s179 = sphi 0, %s165
    %s183 = sphi 0, %s183
    %s185 = sphi 0, %s183
    %s186 = sphi 0, %s185
    %s200 = sphi 0, %s186
    %s206 = sphi 0, %s208
    %s209 = sphi 0, %s206
    %s210 = sphi 0, %s209
    %s226 = sphi 0, %s210
    %s232 = sphi 0, %s234
    %s235 = sphi 0, %s232
    %s236 = sphi 0, %s235
    %s252 = sphi 0, %s236
  $region4: #{student_forward.5} parent=0 // loop_header_branch
    %21 = sbr.rel (%p19) target = $region8
  $region5: #{student_forward.5} parent=0 // loop_body
    %s23 = ssub.s32 %s18, 1
    %s24 = ssub.s32 %s18, 2
    %s25 = sadd.s32 %s18, 1
    %s26 = ssub.s32 %s18, %s25
    %p27 = scmp.eq.s32.totalorder %s26, 0
    %s29 = sadd.s32 %s28, 1
    %s30 = scalar_select %p27, %s28, %s29
    %p33 = pneg %p27
    %p34 = scmp.eq.s32.totalorder %s18, 3
    %p35 = por %p33, %p34
    %p36 = scmp.ne.s32.totalorder %s28, %s31
    %p37 = scmp.eq.s32.totalorder %s18, 0
    %p38 = por %p36, %p37
    %p39 = scmp.ne.s32.totalorder %s28, %s31
    %p40 = scmp.eq.s32.totalorder %s23, 3
    %p41 = por %p39, %p40
    %p42 = scmp.ne.s32.totalorder %s31, %s32
    %p43 = scmp.eq.s32.totalorder %s23, 0
    %p44 = por %p42, %p43
    %p45 = scmp.ne.s32.totalorder %s31, %s32
    %p46 = scmp.eq.s32.totalorder %s24, 3
    %p47 = por %p45, %p46
    %p49 = scmp.ne.s32.totalorder %s32, %s48
    %p50 = scmp.eq.s32.totalorder %s24, 0
    %p51 = por %p49, %p50
    %s53 = sadd.s32 %s52, 1
    %p56 = scmp.eq.s32.totalorder %s18, 3
    %p57 = scmp.ne.s32.totalorder %s52, %s54
    %p58 = scmp.eq.s32.totalorder %s18, 0
    %p59 = por %p57, %p58
    %p60 = scmp.ne.s32.totalorder %s52, %s54
    %p61 = scmp.eq.s32.totalorder %s23, 3
    %p62 = por %p60, %p61
    %p63 = scmp.ne.s32.totalorder %s54, %s55
    %p64 = scmp.eq.s32.totalorder %s23, 0
    %p65 = por %p63, %p64
    %p66 = scmp.ne.s32.totalorder %s54, %s55
    %p67 = scmp.eq.s32.totalorder %s24, 3
    %p68 = por %p66, %p67
    %p70 = scmp.ne.s32.totalorder %s55, %s69
    %p71 = scmp.eq.s32.totalorder %s24, 0
    %p72 = por %p70, %p71
    %s73 = ssub.s32 %s18, %s25
    %p74 = scmp.eq.s32.totalorder %s73, 0
    %s76 = sadd.s32 %s75, 1
    %s77 = scalar_select %p74, %s75, %s76
    %p80 = pneg %p74
    %p81 = scmp.eq.s32.totalorder %s18, 3
    %p82 = por %p80, %p81
    %p83 = scmp.ne.s32.totalorder %s75, %s78
    %p84 = scmp.eq.s32.totalorder %s18, 0
    %p85 = por %p83, %p84
    %p86 = scmp.ne.s32.totalorder %s75, %s78
    %p87 = scmp.eq.s32.totalorder %s23, 3
    %p88 = por %p86, %p87
    %p89 = scmp.ne.s32.totalorder %s78, %s79
    %p90 = scmp.eq.s32.totalorder %s23, 0
    %p91 = por %p89, %p90
    %p92 = scmp.ne.s32.totalorder %s78, %s79
    %p93 = scmp.eq.s32.totalorder %s24, 3
    %p94 = por %p92, %p93
    %p96 = scmp.ne.s32.totalorder %s79, %s95
    %p97 = scmp.eq.s32.totalorder %s24, 0
    %p98 = por %p96, %p97
    %s100 = sadd.s32 %s99, 1
    %p103 = scmp.eq.s32.totalorder %s18, 3
    %p104 = scmp.ne.s32.totalorder %s99, %s101
    %p105 = scmp.eq.s32.totalorder %s18, 0
    %p106 = por %p104, %p105
    %p107 = scmp.ne.s32.totalorder %s99, %s101
    %p108 = scmp.eq.s32.totalorder %s23, 3
    %p109 = por %p107, %p108
    %p110 = scmp.ne.s32.totalorder %s101, %s102
    %p111 = scmp.eq.s32.totalorder %s23, 0
    %p112 = por %p110, %p111
    %p113 = scmp.ne.s32.totalorder %s101, %s102
    %p114 = scmp.eq.s32.totalorder %s24, 3
    %p115 = por %p113, %p114
    %p117 = scmp.ne.s32.totalorder %s102, %s116
    %p118 = scmp.eq.s32.totalorder %s24, 0
    %p119 = por %p117, %p118
    %s121 = sadd.s32 %s120, 1
    %p124 = scmp.eq.s32.totalorder %s18, 3
    %p125 = scmp.ne.s32.totalorder %s120, %s122
    %p126 = scmp.eq.s32.totalorder %s18, 0
    %p127 = por %p125, %p126
    %p128 = scmp.ne.s32.totalorder %s120, %s122
    %p129 = scmp.eq.s32.totalorder %s23, 3
    %p130 = por %p128, %p129
    %p131 = scmp.ne.s32.totalorder %s122, %s123
    %p132 = scmp.eq.s32.totalorder %s23, 0
    %p133 = por %p131, %p132
    %p134 = scmp.ne.s32.totalorder %s122, %s123
    %p135 = scmp.eq.s32.totalorder %s24, 3
    %p136 = por %p134, %p135
    %p138 = scmp.ne.s32.totalorder %s123, %s137
    %p139 = scmp.eq.s32.totalorder %s24, 0
    %p140 = por %p138, %p139
    %s142 = sadd.s32 %s141, 1
    %p145 = scmp.eq.s32.totalorder %s18, 3
    %p146 = scmp.ne.s32.totalorder %s141, %s143
    %p147 = scmp.eq.s32.totalorder %s18, 0
    %p148 = por %p146, %p147
    %p149 = scmp.ne.s32.totalorder %s141, %s143
    %p150 = scmp.eq.s32.totalorder %s23, 3
    %p151 = por %p149, %p150
    %p152 = scmp.ne.s32.totalorder %s143, %s144
    %p153 = scmp.eq.s32.totalorder %s23, 0
    %p154 = por %p152, %p153
    %p155 = scmp.ne.s32.totalorder %s143, %s144
    %p156 = scmp.eq.s32.totalorder %s24, 3
    %p157 = por %p155, %p156
    %p159 = scmp.ne.s32.totalorder %s144, %s158
    %p160 = scmp.eq.s32.totalorder %s24, 0
    %p161 = por %p159, %p160
    %s163 = sadd.s32 %s162, 1
    %p166 = scmp.eq.s32.totalorder %s18, 3
    %p167 = scmp.ne.s32.totalorder %s162, %s164
    %p168 = scmp.eq.s32.totalorder %s18, 0
    %p169 = por %p167, %p168
    %p170 = scmp.ne.s32.totalorder %s162, %s164
    %p171 = scmp.eq.s32.totalorder %s23, 3
    %p172 = por %p170, %p171
    %p173 = scmp.ne.s32.totalorder %s164, %s165
    %p174 = scmp.eq.s32.totalorder %s23, 0
    %p175 = por %p173, %p174
    %p176 = scmp.ne.s32.totalorder %s164, %s165
    %p177 = scmp.eq.s32.totalorder %s24, 3
    %p178 = por %p176, %p177
    %p180 = scmp.ne.s32.totalorder %s165, %s179
    %p181 = scmp.eq.s32.totalorder %s24, 0
    %p182 = por %p180, %p181
    %s184 = sadd.s32 %s183, 1
    %p187 = scmp.eq.s32.totalorder %s18, 3
    %p188 = scmp.ne.s32.totalorder %s183, %s185
    %p189 = scmp.eq.s32.totalorder %s18, 0
    %p190 = por %p188, %p189
    %p191 = scmp.ne.s32.totalorder %s183, %s185
    %p192 = scmp.eq.s32.totalorder %s23, 3
    %p193 = por %p191, %p192
    %p194 = scmp.ne.s32.totalorder %s185, %s186
    %p195 = scmp.eq.s32.totalorder %s23, 0
    %p196 = por %p194, %p195
    %p197 = scmp.ne.s32.totalorder %s185, %s186
    %p198 = scmp.eq.s32.totalorder %s24, 3
    %p199 = por %p197, %p198
    %p201 = scmp.ne.s32.totalorder %s186, %s200
    %p202 = scmp.eq.s32.totalorder %s24, 0
    %p203 = por %p201, %p202
    %s204 = ssub.s32 %s18, %s25
    %p205 = scmp.eq.s32.totalorder %s204, 0
    %s207 = sadd.s32 %s206, 1
    %s208 = scalar_select %p205, %s206, %s207
    %p211 = pneg %p205
    %p212 = scmp.eq.s32.totalorder %s18, 3
    %p213 = por %p211, %p212
    %p214 = scmp.ne.s32.totalorder %s206, %s209
    %p215 = scmp.eq.s32.totalorder %s18, 0
    %p216 = por %p214, %p215
    %p217 = scmp.ne.s32.totalorder %s206, %s209
    %p218 = scmp.eq.s32.totalorder %s23, 3
    %p219 = por %p217, %p218
    %p220 = scmp.ne.s32.totalorder %s209, %s210
    %p221 = scmp.eq.s32.totalorder %s23, 0
    %p222 = por %p220, %p221
    %p223 = scmp.ne.s32.totalorder %s209, %s210
    %p224 = scmp.eq.s32.totalorder %s24, 3
    %p225 = por %p223, %p224
    %p227 = scmp.ne.s32.totalorder %s210, %s226
    %p228 = scmp.eq.s32.totalorder %s24, 0
    %p229 = por %p227, %p228
    %s230 = ssub.s32 %s18, %s25
    %p231 = scmp.eq.s32.totalorder %s230, 0
    %s233 = sadd.s32 %s232, 1
    %s234 = scalar_select %p231, %s232, %s233
    %p237 = pneg %p231
    %p238 = scmp.eq.s32.totalorder %s18, 3
    %p239 = por %p237, %p238
    %p240 = scmp.ne.s32.totalorder %s232, %s235
    %p241 = scmp.eq.s32.totalorder %s18, 0
    %p242 = por %p240, %p241
    %p243 = scmp.ne.s32.totalorder %s232, %s235
    %p244 = scmp.eq.s32.totalorder %s23, 3
    %p245 = por %p243, %p244
    %p246 = scmp.ne.s32.totalorder %s235, %s236
    %p247 = scmp.eq.s32.totalorder %s23, 0
    %p248 = por %p246, %p247
    %p249 = scmp.ne.s32.totalorder %s235, %s236
    %p250 = scmp.eq.s32.totalorder %s24, 3
    %p251 = por %p249, %p250
    %p253 = scmp.ne.s32.totalorder %s236, %s252
    %p254 = scmp.eq.s32.totalorder %s24, 0
    %p255 = por %p253, %p254
    %p256 = scmp.le.s32.totalorder 1, %s18
    %p257 = scmp.lt.s32.totalorder %s18, 5
    %p258 = pnand %p256, %p257
    %p259 = pneg %p258
    // Predicated region
    $region9: #{student_forward.5} parent=5 // pred_check
      _
    $region10: #{student_forward.5} parent=5 // pred_check_branch
      %261 = sbr.rel (%p258) target = $region12
    $region11: #{student_forward.5} parent=5 // pred_region
      %s262 = ssub.s32 %s18, 1
      // Predicated region
      $region13: #{student_forward.5} parent=11 // pred_check
        %p263 = pneg %p65
      $region14: #{student_forward.5} parent=11 // pred_check_branch
        %265 = sbr.rel (%p263) target = $region16
      $region15: #{student_forward.5} parent=11 // pred_region
        _
      $region16: #{student_forward.5} parent=11 // pred_fallthru
        _
      // Predicated region
      $region17: #{student_forward.5} parent=11 // pred_check
        %p266 = pneg %p112
      $region18: #{student_forward.5} parent=11 // pred_check_branch
        %268 = sbr.rel (%p266) target = $region20
      $region19: #{student_forward.5} parent=11 // pred_region
        _
      $region20: #{student_forward.5} parent=11 // pred_fallthru
        _
      // Predicated region
      $region21: #{student_forward.5} parent=11 // pred_check
        %p269 = pneg %p133
      $region22: #{student_forward.5} parent=11 // pred_check_branch
        %271 = sbr.rel (%p269) target = $region24
      $region23: #{student_forward.5} parent=11 // pred_region
        _
      $region24: #{student_forward.5} parent=11 // pred_fallthru
        _
      // Predicated region
      $region25: #{student_forward.5} parent=11 // pred_check
        %p272 = pneg %p154
      $region26: #{student_forward.5} parent=11 // pred_check_branch
        %274 = sbr.rel (%p272) target = $region28
      $region27: #{student_forward.5} parent=11 // pred_region
        _
      $region28: #{student_forward.5} parent=11 // pred_fallthru
        _
      // Predicated region
      $region29: #{student_forward.5} parent=11 // pred_check
        %p275 = pneg %p175
      $region30: #{student_forward.5} parent=11 // pred_check_branch
        %277 = sbr.rel (%p275) target = $region32
      $region31: #{student_forward.5} parent=11 // pred_region
        _
      $region32: #{student_forward.5} parent=11 // pred_fallthru
        _
      // Predicated region
      $region33: #{student_forward.5} parent=11 // pred_check
        %p278 = pneg %p196
      $region34: #{student_forward.5} parent=11 // pred_check_branch
        %280 = sbr.rel (%p278) target = $region36
      $region35: #{student_forward.5} parent=11 // pred_region
        _
      $region36: #{student_forward.5} parent=11 // pred_fallthru
        _
    $region12: #{student_forward.5} parent=5 // pred_fallthru
      _
    %p281 = scmp.lt.s32.totalorder %s18, 4
    // Predicated region
    $region37: #{student_forward.5} parent=5 // pred_check
      %p282 = pneg %p281
    $region38: #{student_forward.5} parent=5 // pred_check_branch
      %284 = sbr.rel (%p282) target = $region40
    $region39: #{student_forward.5} parent=5 // pred_region
      // Predicated region
      $region41: #{student_forward.5} parent=39 // pred_check
        %p285 = pneg %p38
      $region42: #{student_forward.5} parent=39 // pred_check_branch
        %287 = sbr.rel (%p285) target = $region44
      $region43: #{student_forward.5} parent=39 // pred_region
        %s288 = smul.u32 2, %s18
        %p289 = scmp.lt.s32.totalorder %s288, 7
        %s290 = scalar_select %p289, %s288, 7
        %s291 = smul.addr %s290, 4
        %s292 = scalar_lea.vmem %s0, %s291
        %s293 = smul.u32 2, %s18
      $region44: #{student_forward.5} parent=39 // pred_fallthru
        _
      // Predicated region
      $region45: #{student_forward.5} parent=39 // pred_check
        %p294 = pneg %p85
      $region46: #{student_forward.5} parent=39 // pred_check_branch
        %296 = sbr.rel (%p294) target = $region48
      $region47: #{student_forward.5} parent=39 // pred_region
        %s297 = smul.u32 2, %s18
        %p298 = scmp.lt.s32.totalorder %s297, 7
        %s299 = scalar_select %p298, %s297, 7
        %s300 = smul.addr %s299, 8
        %s301 = scalar_lea.vmem %s2, %s300
        %s302 = smul.u32 2, %s18
      $region48: #{student_forward.5} parent=39 // pred_fallthru
        _
    $region40: #{student_forward.5} parent=5 // pred_fallthru
      _
    %p303 = scmp.le.s32.totalorder 1, %s18
    %p304 = scmp.lt.s32.totalorder %s18, 5
    %p305 = pnand %p303, %p304
    %p306 = pneg %p305
    // Predicated region
    $region49: #{student_forward.5} parent=5 // pred_check
      _
    $region50: #{student_forward.5} parent=5 // pred_check_branch
      %308 = sbr.rel (%p305) target = $region52
    $region51: #{student_forward.5} parent=5 // pred_region
      %s309 = ssub.s32 %s18, 1
      %s310 = smul.u32 2, %s23
      %p311 = scmp.lt.s32.totalorder %s310, 7
      %s312 = scalar_select %p311, %s310, 7
      %s313 = smul.addr %s312, 4
      %s314 = scalar_lea.vmem %s0, %s313
      %p315 = pneg %p44
      %p316 = pneg %p41
      %p317 = pneg %p65
      %p318 = pneg %p62
      %s319 = smul.u32 2, %s23
      %p320 = scmp.lt.s32.totalorder %s319, 7
      %s321 = scalar_select %p320, %s319, 7
      %s322 = smul.addr %s321, 8
      %s323 = scalar_lea.vmem %s2, %s322
      %p324 = pneg %p91
      %p325 = pneg %p88
      %p326 = pneg %p112
      %p327 = pneg %p109
      %p328 = pneg %p133
      %p329 = pneg %p130
      %p330 = pneg %p154
      %p331 = pneg %p151
      %p332 = pneg %p175
      %p333 = pneg %p172
      %p334 = pneg %p196
      %p335 = pneg %p193
      %p336 = pneg %p222
      %p337 = pneg %p219
      %s338 = smul.u32 2, %s23
      %p339 = scmp.lt.s32.totalorder %s338, 7
      %s340 = scalar_select %p339, %s338, 7
      %s341 = smul.addr %s340, 8
      %s342 = scalar_lea.vmem %s8, %s341
      %p343 = pneg %p248
      %p344 = pneg %p245
      %s345 = smul.u32 2, %s23
      %p346 = scmp.lt.s32.totalorder %s345, 7
      %s347 = scalar_select %p346, %s345, 7
      %s348 = smul.addr %s347, 8
      %s349 = scalar_lea.vmem %s9, %s348
      %s350 = smul.u32 2, %s23
      %p351 = scmp.lt.s32.totalorder %s350, 7
      %s352 = scalar_select %p351, %s350, 7
      %s353 = smul.addr %s352, 4
      %s354 = scalar_lea.vmem %s0, %s353
      %s355 = smul.u32 2, %s23
      %s356 = smul.u32 2, %s23
      %p357 = scmp.lt.s32.totalorder %s356, 7
      %s358 = scalar_select %p357, %s356, 7
      %s359 = smul.addr %s358, 8
      %s360 = scalar_lea.vmem %s2, %s359
      %s361 = smul.u32 2, %s23
      %s362 = smul.u32 2, %s23
      %p363 = scmp.lt.s32.totalorder %s362, 7
      %s364 = scalar_select %p363, %s362, 7
      %s365 = smul.addr %s364, 8
      %s366 = scalar_lea.vmem %s8, %s365
      %s367 = smul.u32 2, %s23
      %s368 = smul.u32 2, %s23
      %p369 = scmp.lt.s32.totalorder %s368, 7
      %s370 = scalar_select %p369, %s368, 7
      %s371 = smul.addr %s370, 8
      %s372 = scalar_lea.vmem %s9, %s371
      %s373 = smul.u32 2, %s23
      %v375 = vld [vmem:[%s1] sm:$0xff]
      %v376 = vld [vmem:[%s1 + $0x8] sm:$0xff]
      %v377 = vld [vmem:[%s1 + $0x10] sm:$0xff]
      %v378 = vld [vmem:[%s1 + $0x18] sm:$0xff]
      %v379 = vld [vmem:[%s1 + $0x20] sm:$0xff]
      %v380 = vld [vmem:[%s1 + $0x28] sm:$0xff]
      %v381 = vld [vmem:[%s1 + $0x30] sm:$0xff]
      %v382 = vld [vmem:[%s1 + $0x38] sm:$0xff]
      %v383 = vld [vmem:[%s360] sm:$0xff]
      %v384 = vld [vmem:[%s360 + $0x8] sm:$0xff]
      %vm385 = vcmp.ge.f32.partialorder %v375, 0.0
      %vm386 = vcmp.ge.f32.partialorder %v376, 0.0
      %vm387 = vcmp.ge.f32.partialorder %v377, 0.0
      %vm388 = vcmp.ge.f32.partialorder %v378, 0.0
      %vm389 = vcmp.ge.f32.partialorder %v379, 0.0
      %vm390 = vcmp.ge.f32.partialorder %v380, 0.0
      %vm391 = vcmp.ge.f32.partialorder %v381, 0.0
      %vm392 = vcmp.ge.f32.partialorder %v382, 0.0
      %v393 = vmul.f32 %v375, 0.01
      %v394 = vmul.f32 %v376, 0.01
      %v395 = vmul.f32 %v377, 0.01
      %v396 = vmul.f32 %v378, 0.01
      %v397 = vmul.f32 %v379, 0.01
      %v398 = vmul.f32 %v380, 0.01
      %v399 = vmul.f32 %v381, 0.01
      %v400 = vmul.f32 %v382, 0.01
      %v401 = vsel %vm385, %v375, %v393
      %v402 = vsel %vm386, %v376, %v394
      %v403 = vsel %vm387, %v377, %v395
      %v404 = vsel %vm388, %v378, %v396
      %v405 = vsel %vm389, %v379, %v397
      %v406 = vsel %vm390, %v380, %v398
      %v407 = vsel %vm391, %v381, %v399
      %v408 = vsel %vm392, %v382, %v400
      %vm409 = vcmp.ge.f32.partialorder %v383, 0.0
      %vm410 = vcmp.ge.f32.partialorder %v384, 0.0
      %v411 = vmul.f32 %v383, 0.01
      %v412 = vmul.f32 %v384, 0.01
      %v413 = vsel %vm409, %v383, %v411
      %v414 = vsel %vm410, %v384, %v412
      %v415 = vld [vmem:[%s354] sm:$0xf]
      %v416 = vld [vmem:[%s354 + $0x4] sm:$0xf]
      %v417 = vunpack.c.l.bf16 %v415
      %v418 = vunpack.c.l.bf16 %v416
      %vm419 = vcmask 523264
      %v420 = vsel %vm419, %v417, 0.0
      %421 = vadd.xlane.f32.xlu0 %v420
      %v422 = vpop.xlane.xlu0 %421
      %v423 = vsel %vm419, %v418, 0.0
      %424 = vadd.xlane.f32.xlu0 %v423
      %v425 = vpop.xlane.xlu0 %424
      %v426 = vmax.f32 %v422, 1.0
      %v427 = vmax.f32 %v425, 1.0
      %v428 = vrcp.pop %v426
      %v429 = vmul.f32 1.0, %v428
      %v430 = vrcp.pop %v427
      %v431 = vmul.f32 1.0, %v430
      %v432 = vpack.c.bf16 %v402, %v401
      %v433 = vpack.c.bf16 %v404, %v403
      %v434 = vpack.c.bf16 %v406, %v405
      %v435 = vpack.c.bf16 %v408, %v407
      %v438 = vunpack.c.l.b16 %v415
      %v439 = vunpack.c.l.b16 %v416
      %v440 = vpack.c.b16 %v439, %v438
      %v442 = vsel %vm419, %v440, 0
      %444 = vmatprep.subr.bf16.mxu0 0
      %445 = vmatpush1.bf16.msra.mxu0 0
      %446 = vmatprep.subr.bf16.mxu0 0
      %447 = vmatpush1.bf16.msra.mxu0 0
      %448 = vmatprep.subr.bf16.mxu0 0
      %449 = vmatpush1.bf16.msra.mxu0 0
      %450 = vmatprep.subr.bf16.mxu0 0
      %451 = vmatpush1.bf16.msra.mxu0 0
      %452 = vmatprep.subr.bf16.mxu0 0
      %453 = vmatpush1.bf16.msra.mxu0 %v435
      %454 = vmatprep.subr.bf16.mxu0 0
      %455 = vmatpush1.bf16.msra.mxu0 %v434
      %456 = vmatprep.subr.bf16.mxu0 0
      %457 = vmatpush1.bf16.msra.mxu0 %v433
      %458 = vmatprep.subr.bf16.mxu0 0
      %459 = vmatpush1.bf16.msra.mxu0 %v432
      %460 = vmatprep.subr.bf16.mxu0 0
      %461 = vmatpush2.bf16.msra.mxu0 0
      %462 = vmatprep.subr.bf16.mxu0 0
      %463 = vmatpush2.bf16.msra.mxu0 0
      %464 = vmatprep.subr.bf16.mxu0 0
      %465 = vmatpush2.bf16.msra.mxu0 0
      %466 = vmatprep.subr.bf16.mxu0 0
      %467 = vmatpush2.bf16.msra.mxu0 0
      %468 = vmatprep.subr.bf16.mxu0 0
      %469 = vmatpush2.bf16.msra.mxu0 0
      %470 = vmatprep.subr.bf16.mxu0 0
      %471 = vmatpush2.bf16.msra.mxu0 0
      %472 = vmatprep.subr.bf16.mxu0 0
      %473 = vmatpush2.bf16.msra.mxu0 0
      %474 = vmatprep.subr.bf16.mxu0 0
      %475 = vmatpush2.bf16.msra.mxu0 0
      %476 = vmatprep.mubr.bf16.mxu0 0
      %477 = vmatmul.mubr.bf16.gmra.mxu0 %v442
      %v478 = vpop.f32.mrf.mxu0
      %v479 = vadd.f32 0.0, %v478
      %v480 = vpop.f32.mrf.mxu0
      %v481 = vpop.f32.mrf.mxu0
      %v482 = vadd.f32 0.0, %v481
      %v483 = vpop.f32.mrf.mxu0
      %484 = vdwg.mxu0
      %v485 = vmul.f32 %v479, %v429
      %v486 = vmul.f32 %v482, %v431
      %v487 = vpack.c.bf16 %v486, %v485
      %v488 = vld [vmem:[%s3] sm:$0xf]
      %v489 = vld [vmem:[%s3 + $0x4] sm:$0xf]
      %v490 = vld [vmem:[%s3 + $0x8] sm:$0xf]
      %v491 = vld [vmem:[%s3 + $0xc] sm:$0xf]
      %v492 = vpack.c.bf16 %v414, %v413
      %v493 = vld [vmem:[%s4] sm:$0xf]
      %v494 = vld [vmem:[%s4 + $0x4] sm:$0xf]
      %v495 = vld [vmem:[%s4 + $0x8] sm:$0xf]
      %v496 = vld [vmem:[%s4 + $0xc] sm:$0xf]
      %v501 = vunpack.c.l.b16 %v493
      %v502 = vunpack.c.l.b16 %v494
      %v503 = vunpack.c.l.b16 %v495
      %v504 = vunpack.c.l.b16 %v496
      %v505 = vpack.c.b16 %v502, %v501
      %v506 = vpack.c.b16 %v504, %v503
      %vm509 = vcmask 261120
      %v511 = vsel %vm509, %v492, 0
      %513 = vmatprep.subr.bf16.mxu0 0
      %514 = vmatpush1.bf16.msra.mxu0 0
      %515 = vmatprep.subr.bf16.mxu0 0
      %516 = vmatpush1.bf16.msra.mxu0 0
      %517 = vmatprep.subr.bf16.mxu0 0
      %518 = vmatpush1.bf16.msra.mxu0 0
      %519 = vmatprep.subr.bf16.mxu0 0
      %520 = vmatpush1.bf16.msra.mxu0 0
      %521 = vmatprep.subr.bf16.mxu0 0
      %522 = vmatpush1.bf16.msra.mxu0 0
      %523 = vmatprep.subr.bf16.mxu0 0
      %524 = vmatpush1.bf16.msra.mxu0 0
      %525 = vmatprep.subr.bf16.mxu0 0
      %526 = vmatpush1.bf16.msra.mxu0 %v506
      %527 = vmatprep.subr.bf16.mxu0 0
      %528 = vmatpush1.bf16.msra.mxu0 %v505
      %529 = vmatprep.subr.bf16.mxu0 0
      %530 = vmatpush2.bf16.msra.mxu0 0
      %531 = vmatprep.subr.bf16.mxu0 0
      %532 = vmatpush2.bf16.msra.mxu0 0
      %533 = vmatprep.subr.bf16.mxu0 0
      %534 = vmatpush2.bf16.msra.mxu0 0
      %535 = vmatprep.subr.bf16.mxu0 0
      %536 = vmatpush2.bf16.msra.mxu0 0
      %537 = vmatprep.subr.bf16.mxu0 0
      %538 = vmatpush2.bf16.msra.mxu0 0
      %539 = vmatprep.subr.bf16.mxu0 0
      %540 = vmatpush2.bf16.msra.mxu0 0
      %541 = vmatprep.subr.bf16.mxu0 0
      %542 = vmatpush2.bf16.msra.mxu0 0
      %543 = vmatprep.subr.bf16.mxu0 0
      %544 = vmatpush2.bf16.msra.mxu0 0
      %545 = vmatprep.mubr.bf16.mxu0 0
      %546 = vmatmul.mubr.bf16.gmra.mxu0 %v511
      %v547 = vpop.f32.mrf.mxu0
      %v548 = vadd.f32 0.0, %v547
      %v549 = vpop.f32.mrf.mxu0
      %v550 = vpop.f32.mrf.mxu0
      %v551 = vadd.f32 0.0, %v550
      %v552 = vpop.f32.mrf.mxu0
      %553 = vdwg.mxu0
      %v558 = vunpack.c.l.b16 %v488
      %v559 = vunpack.c.l.b16 %v489
      %v560 = vunpack.c.l.b16 %v490
      %v561 = vunpack.c.l.b16 %v491
      %v562 = vpack.c.b16 %v559, %v558
      %v563 = vpack.c.b16 %v561, %v560
      %v567 = vsel %vm509, %v487, 0
      %569 = vmatprep.subr.bf16.mxu0 0
      %570 = vmatpush1.bf16.msra.mxu0 0
      %571 = vmatprep.subr.bf16.mxu0 0
      %572 = vmatpush1.bf16.msra.mxu0 0
      %573 = vmatprep.subr.bf16.mxu0 0
      %574 = vmatpush1.bf16.msra.mxu0 0
      %575 = vmatprep.subr.bf16.mxu0 0
      %576 = vmatpush1.bf16.msra.mxu0 0
      %577 = vmatprep.subr.bf16.mxu0 0
      %578 = vmatpush1.bf16.msra.mxu0 0
      %579 = vmatprep.subr.bf16.mxu0 0
      %580 = vmatpush1.bf16.msra.mxu0 0
      %581 = vmatprep.subr.bf16.mxu0 0
      %582 = vmatpush1.bf16.msra.mxu0 %v563
      %583 = vmatprep.subr.bf16.mxu0 0
      %584 = vmatpush1.bf16.msra.mxu0 %v562
      %585 = vmatprep.subr.bf16.mxu0 0
      %586 = vmatpush2.bf16.msra.mxu0 0
      %587 = vmatprep.subr.bf16.mxu0 0
      %588 = vmatpush2.bf16.msra.mxu0 0
      %589 = vmatprep.subr.bf16.mxu0 0
      %590 = vmatpush2.bf16.msra.mxu0 0
      %591 = vmatprep.subr.bf16.mxu0 0
      %592 = vmatpush2.bf16.msra.mxu0 0
      %593 = vmatprep.subr.bf16.mxu0 0
      %594 = vmatpush2.bf16.msra.mxu0 0
      %595 = vmatprep.subr.bf16.mxu0 0
      %596 = vmatpush2.bf16.msra.mxu0 0
      %597 = vmatprep.subr.bf16.mxu0 0
      %598 = vmatpush2.bf16.msra.mxu0 0
      %599 = vmatprep.subr.bf16.mxu0 0
      %600 = vmatpush2.bf16.msra.mxu0 0
      %601 = vmatprep.mubr.bf16.mxu0 0
      %602 = vmatmul.mubr.bf16.gmra.mxu0 %v567
      %v603 = vpop.f32.mrf.mxu0
      %v604 = vadd.f32 %v548, %v603
      %v605 = vpop.f32.mrf.mxu0
      %v606 = vpop.f32.mrf.mxu0
      %v607 = vadd.f32 %v551, %v606
      %v608 = vpop.f32.mrf.mxu0
      %609 = vdwg.mxu0
      %v610 = vld [vmem:[%s5] sm:$0x1]
      %v612 = vlaneseq
      %v613 = vshrl.u32 %v612, 7
      %v614 = vsub.s32 0, %v613
      %v615 = vrot.slane %v610, %v614
      %v617 = vadd.f32 %v604, %v615
      %v618 = vadd.f32 %v607, %v615
      %vm619 = vcmask 130048
      %620 = vst.msk [vmem:[%s366] sm:$0xff] %vm619, %v617
      %621 = vst.msk [vmem:[%s366 + $0x8] sm:$0xff] %vm619, %v618
      %v622 = vld [vmem:[%s6] sm:$0x1]
      %v624 = vlaneseq
      %v625 = vshrl.u32 %v624, 7
      %v626 = vsub.s32 0, %v625
      %v627 = vrot.slane %v622, %v626
      %v629 = vmul.f32 %v617, %v627
      %v630 = vmul.f32 %v618, %v627
      %v631 = vsel %vm619, %v629, 0.0
      %632 = vadd.xlane.f32.xlu0 %v631
      %v633 = vpop.xlane.xlu0 %632
      %v634 = vsel %vm619, %v630, 0.0
      %635 = vadd.xlane.f32.xlu0 %v634
      %v636 = vpop.xlane.xlu0 %635
      %v637 = vld [vmem:[#allocation2] sm:$0x1]
      %v639 = vlaneseq
      %v640 = vshrl.u32 %v639, 7
      %v641 = vsub.s32 0, %v640
      %v642 = vrot.slane %v637, %v641
      %v644 = vadd.f32 %v633, %v642
      %v645 = vadd.f32 %v636, %v642
      %vm646 = vcmask 7168
      %647 = vst.msk [vmem:[%s372] sm:$0xff] %vm646, %v644
      %648 = vst.msk [vmem:[%s372 + $0x8] sm:$0xff] %vm646, %v645
      %s649 = smul.u32 2, %s23
      %p650 = scmp.lt.s32.totalorder %s649, 7
      %s651 = scalar_select %p650, %s649, 7
      %s652 = smul.addr %s651, 8
      %s653 = scalar_lea.vmem %s8, %s652
      %s654 = smul.u32 2, %s23
      %p655 = scmp.lt.s32.totalorder %s654, 7
      %s656 = scalar_select %p655, %s654, 7
      %s657 = smul.addr %s656, 8
      %s658 = scalar_lea.vmem %s9, %s657
      // Predicated region
      $region53: #{student_forward.5} parent=51 // pred_check
        %p659 = pneg %p219
      $region54: #{student_forward.5} parent=51 // pred_check_branch
        %661 = sbr.rel (%p659) target = $region56
      $region55: #{student_forward.5} parent=51 // pred_region
        %s662 = smul.u32 2, %s23
      $region56: #{student_forward.5} parent=51 // pred_fallthru
        _
      // Predicated region
      $region57: #{student_forward.5} parent=51 // pred_check
        %p663 = pneg %p245
      $region58: #{student_forward.5} parent=51 // pred_check_branch
        %665 = sbr.rel (%p663) target = $region60
      $region59: #{student_forward.5} parent=51 // pred_region
        %s666 = smul.u32 2, %s23
      $region60: #{student_forward.5} parent=51 // pred_fallthru
        _
    $region52: #{student_forward.5} parent=5 // pred_fallthru
      _
    %p667 = scmp.le.s32.totalorder 2, %s18
    // Predicated region
    $region61: #{student_forward.5} parent=5 // pred_check
      %p668 = pneg %p667
    $region62: #{student_forward.5} parent=5 // pred_check_branch
      %670 = sbr.rel (%p668) target = $region64
    $region63: #{student_forward.5} parent=5 // pred_region
      %s671 = ssub.s32 %s18, 2
      // Predicated region
      $region65: #{student_forward.5} parent=63 // pred_check
        %p672 = pneg %p225
      $region66: #{student_forward.5} parent=63 // pred_check_branch
        %674 = sbr.rel (%p672) target = $region68
      $region67: #{student_forward.5} parent=63 // pred_region
        %s675 = smul.u32 2, %s24
        %p676 = scmp.lt.s32.totalorder %s675, 7
        %s677 = scalar_select %p676, %s675, 7
        %s678 = smul.addr %s677, 8
        %s679 = scalar_lea.vmem %s8, %s678
      $region68: #{student_forward.5} parent=63 // pred_fallthru
        _
      // Predicated region
      $region69: #{student_forward.5} parent=63 // pred_check
        %p680 = pneg %p251
      $region70: #{student_forward.5} parent=63 // pred_check_branch
        %682 = sbr.rel (%p680) target = $region72
      $region71: #{student_forward.5} parent=63 // pred_region
        %s683 = smul.u32 2, %s24
        %p684 = scmp.lt.s32.totalorder %s683, 7
        %s685 = scalar_select %p684, %s683, 7
        %s686 = smul.addr %s685, 8
        %s687 = scalar_lea.vmem %s9, %s686
      $region72: #{student_forward.5} parent=63 // pred_fallthru
        _
    $region64: #{student_forward.5} parent=5 // pred_fallthru
      _
  $region6: #{student_forward.5} parent=0 // loop_footer
    %s22 = sadd.s32 1, %s18
  $region7: #{student_forward.5} parent=0 // loop_footer_branch
    %17 = sbr.rel target = $region3
  $region8: #{student_forward.5} parent=0 // loop_exit
    _

// kernel: student_forward.4
$region0: #{student_forward.4}
  #allocation0 [shape = 'u32[]', space=smem, size = 0x4, offset = 0x4, fixed_abs, tag = 'smem constant byte address 0x4 - core index']
  #allocation1 [shape = 'u32[144,128]{1,0:T(1,128)}', space=vmem, size = 0x12000, scoped, tag = 'internal scratch']
  %s0 = inlined_call_operand.vmem [shape: bf16[64,64], index: 0, kind: input, shape index: {}]
  %s1 = inlined_call_operand.vmem [shape: f32[64,32], index: 1, kind: input, shape index: {}, may-alias: {1,2}]
  %s2 = inlined_call_operand.vmem [shape: f32[64,32], index: 2, kind: input, shape index: {}, may-alias: {1,2}]
  %s3 = inlined_call_operand.vmem [shape: bf16[32,32], index: 3, kind: input, shape index: {}]
  %s4 = inlined_call_operand.vmem [shape: bf16[32,32], index: 4, kind: input, shape index: {}]
  %s5 = inlined_call_operand.vmem [shape: f32[1,32], index: 5, kind: input, shape index: {}]
  %s6 = inlined_call_operand.vmem [shape: f32[64,32], index: 6, kind: output, shape index: {}]
  %s7 = sld [smem:[#allocation0]]
  $region57: #{student_forward.4} parent=0
    _
  %s9 = ssub.s32 1, %s7
  %s10 = scalar_select 0, %s9, %s7
  loop: start=0, step=1, limit=6
  $region2: #{student_forward.4} parent=0 // loop_pre_header
    _
  $region3: #{student_forward.4} parent=0 // loop_header
    %s12 = sphi 0, %s16
    %p13 = scmp.ge.s32.totalorder %s12, 6
    %s22 = sphi 0, %s24
    %s25 = sphi 0, %s22
    %s26 = sphi 0, %s25
    %s42 = sphi 0, %s26
    %s46 = sphi 0, %s46
    %s48 = sphi 0, %s46
    %s49 = sphi 0, %s48
    %s63 = sphi 0, %s49
    %s69 = sphi 0, %s71
    %s72 = sphi 0, %s69
    %s73 = sphi 0, %s72
    %s89 = sphi 0, %s73
    %s93 = sphi 0, %s93
    %s95 = sphi 0, %s93
    %s96 = sphi 0, %s95
    %s110 = sphi 0, %s96
    %s114 = sphi 0, %s114
    %s116 = sphi 0, %s114
    %s117 = sphi 0, %s116
    %s131 = sphi 0, %s117
    %s135 = sphi 0, %s135
    %s137 = sphi 0, %s135
    %s138 = sphi 0, %s137
    %s152 = sphi 0, %s138
    %s158 = sphi 0, %s160
    %s161 = sphi 0, %s158
    %s162 = sphi 0, %s161
    %s178 = sphi 0, %s162
  $region4: #{student_forward.4} parent=0 // loop_header_branch
    %15 = sbr.rel (%p13) target = $region8
  $region5: #{student_forward.4} parent=0 // loop_body
    %s17 = ssub.s32 %s12, 1
    %s18 = ssub.s32 %s12, 2
    %s19 = sadd.s32 %s12, 1
    %s20 = ssub.s32 %s12, %s19
    %p21 = scmp.eq.s32.totalorder %s20, 0
    %s23 = sadd.s32 %s22, 1
    %s24 = scalar_select %p21, %s22, %s23
    %p27 = pneg %p21
    %p28 = scmp.eq.s32.totalorder %s12, 3
    %p29 = por %p27, %p28
    %p30 = scmp.ne.s32.totalorder %s22, %s25
    %p31 = scmp.eq.s32.totalorder %s12, 0
    %p32 = por %p30, %p31
    %p33 = scmp.ne.s32.totalorder %s22, %s25
    %p34 = scmp.eq.s32.totalorder %s17, 3
    %p35 = por %p33, %p34
    %p36 = scmp.ne.s32.totalorder %s25, %s26
    %p37 = scmp.eq.s32.totalorder %s17, 0
    %p38 = por %p36, %p37
    %p39 = scmp.ne.s32.totalorder %s25, %s26
    %p40 = scmp.eq.s32.totalorder %s18, 3
    %p41 = por %p39, %p40
    %p43 = scmp.ne.s32.totalorder %s26, %s42
    %p44 = scmp.eq.s32.totalorder %s18, 0
    %p45 = por %p43, %p44
    %s47 = sadd.s32 %s46, 1
    %p50 = scmp.eq.s32.totalorder %s12, 3
    %p51 = scmp.ne.s32.totalorder %s46, %s48
    %p52 = scmp.eq.s32.totalorder %s12, 0
    %p53 = por %p51, %p52
    %p54 = scmp.ne.s32.totalorder %s46, %s48
    %p55 = scmp.eq.s32.totalorder %s17, 3
    %p56 = por %p54, %p55
    %p57 = scmp.ne.s32.totalorder %s48, %s49
    %p58 = scmp.eq.s32.totalorder %s17, 0
    %p59 = por %p57, %p58
    %p60 = scmp.ne.s32.totalorder %s48, %s49
    %p61 = scmp.eq.s32.totalorder %s18, 3
    %p62 = por %p60, %p61
    %p64 = scmp.ne.s32.totalorder %s49, %s63
    %p65 = scmp.eq.s32.totalorder %s18, 0
    %p66 = por %p64, %p65
    %s67 = ssub.s32 %s12, %s19
    %p68 = scmp.eq.s32.totalorder %s67, 0
    %s70 = sadd.s32 %s69, 1
    %s71 = scalar_select %p68, %s69, %s70
    %p74 = pneg %p68
    %p75 = scmp.eq.s32.totalorder %s12, 3
    %p76 = por %p74, %p75
    %p77 = scmp.ne.s32.totalorder %s69, %s72
    %p78 = scmp.eq.s32.totalorder %s12, 0
    %p79 = por %p77, %p78
    %p80 = scmp.ne.s32.totalorder %s69, %s72
    %p81 = scmp.eq.s32.totalorder %s17, 3
    %p82 = por %p80, %p81
    %p83 = scmp.ne.s32.totalorder %s72, %s73
    %p84 = scmp.eq.s32.totalorder %s17, 0
    %p85 = por %p83, %p84
    %p86 = scmp.ne.s32.totalorder %s72, %s73
    %p87 = scmp.eq.s32.totalorder %s18, 3
    %p88 = por %p86, %p87
    %p90 = scmp.ne.s32.totalorder %s73, %s89
    %p91 = scmp.eq.s32.totalorder %s18, 0
    %p92 = por %p90, %p91
    %s94 = sadd.s32 %s93, 1
    %p97 = scmp.eq.s32.totalorder %s12, 3
    %p98 = scmp.ne.s32.totalorder %s93, %s95
    %p99 = scmp.eq.s32.totalorder %s12, 0
    %p100 = por %p98, %p99
    %p101 = scmp.ne.s32.totalorder %s93, %s95
    %p102 = scmp.eq.s32.totalorder %s17, 3
    %p103 = por %p101, %p102
    %p104 = scmp.ne.s32.totalorder %s95, %s96
    %p105 = scmp.eq.s32.totalorder %s17, 0
    %p106 = por %p104, %p105
    %p107 = scmp.ne.s32.totalorder %s95, %s96
    %p108 = scmp.eq.s32.totalorder %s18, 3
    %p109 = por %p107, %p108
    %p111 = scmp.ne.s32.totalorder %s96, %s110
    %p112 = scmp.eq.s32.totalorder %s18, 0
    %p113 = por %p111, %p112
    %s115 = sadd.s32 %s114, 1
    %p118 = scmp.eq.s32.totalorder %s12, 3
    %p119 = scmp.ne.s32.totalorder %s114, %s116
    %p120 = scmp.eq.s32.totalorder %s12, 0
    %p121 = por %p119, %p120
    %p122 = scmp.ne.s32.totalorder %s114, %s116
    %p123 = scmp.eq.s32.totalorder %s17, 3
    %p124 = por %p122, %p123
    %p125 = scmp.ne.s32.totalorder %s116, %s117
    %p126 = scmp.eq.s32.totalorder %s17, 0
    %p127 = por %p125, %p126
    %p128 = scmp.ne.s32.totalorder %s116, %s117
    %p129 = scmp.eq.s32.totalorder %s18, 3
    %p130 = por %p128, %p129
    %p132 = scmp.ne.s32.totalorder %s117, %s131
    %p133 = scmp.eq.s32.totalorder %s18, 0
    %p134 = por %p132, %p133
    %s136 = sadd.s32 %s135, 1
    %p139 = scmp.eq.s32.totalorder %s12, 3
    %p140 = scmp.ne.s32.totalorder %s135, %s137
    %p141 = scmp.eq.s32.totalorder %s12, 0
    %p142 = por %p140, %p141
    %p143 = scmp.ne.s32.totalorder %s135, %s137
    %p144 = scmp.eq.s32.totalorder %s17, 3
    %p145 = por %p143, %p144
    %p146 = scmp.ne.s32.totalorder %s137, %s138
    %p147 = scmp.eq.s32.totalorder %s17, 0
    %p148 = por %p146, %p147
    %p149 = scmp.ne.s32.totalorder %s137, %s138
    %p150 = scmp.eq.s32.totalorder %s18, 3
    %p151 = por %p149, %p150
    %p153 = scmp.ne.s32.totalorder %s138, %s152
    %p154 = scmp.eq.s32.totalorder %s18, 0
    %p155 = por %p153, %p154
    %s156 = ssub.s32 %s12, %s19
    %p157 = scmp.eq.s32.totalorder %s156, 0
    %s159 = sadd.s32 %s158, 1
    %s160 = scalar_select %p157, %s158, %s159
    %p163 = pneg %p157
    %p164 = scmp.eq.s32.totalorder %s12, 3
    %p165 = por %p163, %p164
    %p166 = scmp.ne.s32.totalorder %s158, %s161
    %p167 = scmp.eq.s32.totalorder %s12, 0
    %p168 = por %p166, %p167
    %p169 = scmp.ne.s32.totalorder %s158, %s161
    %p170 = scmp.eq.s32.totalorder %s17, 3
    %p171 = por %p169, %p170
    %p172 = scmp.ne.s32.totalorder %s161, %s162
    %p173 = scmp.eq.s32.totalorder %s17, 0
    %p174 = por %p172, %p173
    %p175 = scmp.ne.s32.totalorder %s161, %s162
    %p176 = scmp.eq.s32.totalorder %s18, 3
    %p177 = por %p175, %p176
    %p179 = scmp.ne.s32.totalorder %s162, %s178
    %p180 = scmp.eq.s32.totalorder %s18, 0
    %p181 = por %p179, %p180
    %p182 = scmp.le.s32.totalorder 1, %s12
    %p183 = scmp.lt.s32.totalorder %s12, 5
    %p184 = pnand %p182, %p183
    %p185 = pneg %p184
    // Predicated region
    $region9: #{student_forward.4} parent=5 // pred_check
      _
    $region10: #{student_forward.4} parent=5 // pred_check_branch
      %187 = sbr.rel (%p184) target = $region12
    $region11: #{student_forward.4} parent=5 // pred_region
      %s188 = ssub.s32 %s12, 1
      // Predicated region
      $region13: #{student_forward.4} parent=11 // pred_check
        %p189 = pneg %p59
      $region14: #{student_forward.4} parent=11 // pred_check_branch
        %191 = sbr.rel (%p189) target = $region16
      $region15: #{student_forward.4} parent=11 // pred_region
        _
      $region16: #{student_forward.4} parent=11 // pred_fallthru
        _
      // Predicated region
      $region17: #{student_forward.4} parent=11 // pred_check
        %p192 = pneg %p106
      $region18: #{student_forward.4} parent=11 // pred_check_branch
        %194 = sbr.rel (%p192) target = $region20
      $region19: #{student_forward.4} parent=11 // pred_region
        _
      $region20: #{student_forward.4} parent=11 // pred_fallthru
        _
      // Predicated region
      $region21: #{student_forward.4} parent=11 // pred_check
        %p195 = pneg %p127
      $region22: #{student_forward.4} parent=11 // pred_check_branch
        %197 = sbr.rel (%p195) target = $region24
      $region23: #{student_forward.4} parent=11 // pred_region
        _
      $region24: #{student_forward.4} parent=11 // pred_fallthru
        _
      // Predicated region
      $region25: #{student_forward.4} parent=11 // pred_check
        %p198 = pneg %p148
      $region26: #{student_forward.4} parent=11 // pred_check_branch
        %200 = sbr.rel (%p198) target = $region28
      $region27: #{student_forward.4} parent=11 // pred_region
        _
      $region28: #{student_forward.4} parent=11 // pred_fallthru
        _
    $region12: #{student_forward.4} parent=5 // pred_fallthru
      _
    %p201 = scmp.lt.s32.totalorder %s12, 4
    // Predicated region
    $region29: #{student_forward.4} parent=5 // pred_check
      %p202 = pneg %p201
    $region30: #{student_forward.4} parent=5 // pred_check_branch
      %204 = sbr.rel (%p202) target = $region32
    $region31: #{student_forward.4} parent=5 // pred_region
      // Predicated region
      $region33: #{student_forward.4} parent=31 // pred_check
        %p205 = pneg %p32
      $region34: #{student_forward.4} parent=31 // pred_check_branch
        %207 = sbr.rel (%p205) target = $region36
      $region35: #{student_forward.4} parent=31 // pred_region
        %s208 = smul.u32 2, %s12
        %p209 = scmp.lt.s32.totalorder %s208, 7
        %s210 = scalar_select %p209, %s208, 7
        %s211 = smul.addr %s210, 4
        %s212 = scalar_lea.vmem %s0, %s211
        %s213 = smul.u32 2, %s12
      $region36: #{student_forward.4} parent=31 // pred_fallthru
        _
      // Predicated region
      $region37: #{student_forward.4} parent=31 // pred_check
        %p214 = pneg %p79
      $region38: #{student_forward.4} parent=31 // pred_check_branch
        %216 = sbr.rel (%p214) target = $region40
      $region39: #{student_forward.4} parent=31 // pred_region
        %s217 = smul.u32 2, %s12
        %p218 = scmp.lt.s32.totalorder %s217, 7
        %s219 = scalar_select %p218, %s217, 7
        %s220 = smul.addr %s219, 8
        %s221 = scalar_lea.vmem %s2, %s220
        %s222 = smul.u32 2, %s12
      $region40: #{student_forward.4} parent=31 // pred_fallthru
        _
    $region32: #{student_forward.4} parent=5 // pred_fallthru
      _
    %p223 = scmp.le.s32.totalorder 1, %s12
    %p224 = scmp.lt.s32.totalorder %s12, 5
    %p225 = pnand %p223, %p224
    %p226 = pneg %p225
    // Predicated region
    $region41: #{student_forward.4} parent=5 // pred_check
      _
    $region42: #{student_forward.4} parent=5 // pred_check_branch
      %228 = sbr.rel (%p225) target = $region44
    $region43: #{student_forward.4} parent=5 // pred_region
      %s229 = ssub.s32 %s12, 1
      %s230 = smul.u32 2, %s17
      %p231 = scmp.lt.s32.totalorder %s230, 7
      %s232 = scalar_select %p231, %s230, 7
      %s233 = smul.addr %s232, 4
      %s234 = scalar_lea.vmem %s0, %s233
      %p235 = pneg %p38
      %p236 = pneg %p35
      %p237 = pneg %p59
      %p238 = pneg %p56
      %s239 = smul.u32 2, %s17
      %p240 = scmp.lt.s32.totalorder %s239, 7
      %s241 = scalar_select %p240, %s239, 7
      %s242 = smul.addr %s241, 8
      %s243 = scalar_lea.vmem %s2, %s242
      %p244 = pneg %p85
      %p245 = pneg %p82
      %p246 = pneg %p106
      %p247 = pneg %p103
      %p248 = pneg %p127
      %p249 = pneg %p124
      %p250 = pneg %p148
      %p251 = pneg %p145
      %p252 = pneg %p174
      %p253 = pneg %p171
      %s254 = smul.u32 2, %s17
      %p255 = scmp.lt.s32.totalorder %s254, 7
      %s256 = scalar_select %p255, %s254, 7
      %s257 = smul.addr %s256, 8
      %s258 = scalar_lea.vmem %s6, %s257
      %s259 = smul.u32 2, %s17
      %p260 = scmp.lt.s32.totalorder %s259, 7
      %s261 = scalar_select %p260, %s259, 7
      %s262 = smul.addr %s261, 4
      %s263 = scalar_lea.vmem %s0, %s262
      %s264 = smul.u32 2, %s17
      %s265 = smul.u32 2, %s17
      %p266 = scmp.lt.s32.totalorder %s265, 7
      %s267 = scalar_select %p266, %s265, 7
      %s268 = smul.addr %s267, 8
      %s269 = scalar_lea.vmem %s2, %s268
      %s270 = smul.u32 2, %s17
      %s271 = smul.u32 2, %s17
      %p272 = scmp.lt.s32.totalorder %s271, 7
      %s273 = scalar_select %p272, %s271, 7
      %s274 = smul.addr %s273, 8
      %s275 = scalar_lea.vmem %s6, %s274
      %s276 = smul.u32 2, %s17
      %v278 = vld [vmem:[%s1] sm:$0xff]
      %v279 = vld [vmem:[%s1 + $0x8] sm:$0xff]
      %v280 = vld [vmem:[%s1 + $0x10] sm:$0xff]
      %v281 = vld [vmem:[%s1 + $0x18] sm:$0xff]
      %v282 = vld [vmem:[%s1 + $0x20] sm:$0xff]
      %v283 = vld [vmem:[%s1 + $0x28] sm:$0xff]
      %v284 = vld [vmem:[%s1 + $0x30] sm:$0xff]
      %v285 = vld [vmem:[%s1 + $0x38] sm:$0xff]
      %v286 = vld [vmem:[%s269] sm:$0xff]
      %v287 = vld [vmem:[%s269 + $0x8] sm:$0xff]
      %vm288 = vcmp.ge.f32.partialorder %v278, 0.0
      %vm289 = vcmp.ge.f32.partialorder %v279, 0.0
      %vm290 = vcmp.ge.f32.partialorder %v280, 0.0
      %vm291 = vcmp.ge.f32.partialorder %v281, 0.0
      %vm292 = vcmp.ge.f32.partialorder %v282, 0.0
      %vm293 = vcmp.ge.f32.partialorder %v283, 0.0
      %vm294 = vcmp.ge.f32.partialorder %v284, 0.0
      %vm295 = vcmp.ge.f32.partialorder %v285, 0.0
      %v296 = vmul.f32 %v278, 0.01
      %v297 = vmul.f32 %v279, 0.01
      %v298 = vmul.f32 %v280, 0.01
      %v299 = vmul.f32 %v281, 0.01
      %v300 = vmul.f32 %v282, 0.01
      %v301 = vmul.f32 %v283, 0.01
      %v302 = vmul.f32 %v284, 0.01
      %v303 = vmul.f32 %v285, 0.01
      %v304 = vsel %vm288, %v278, %v296
      %v305 = vsel %vm289, %v279, %v297
      %v306 = vsel %vm290, %v280, %v298
      %v307 = vsel %vm291, %v281, %v299
      %v308 = vsel %vm292, %v282, %v300
      %v309 = vsel %vm293, %v283, %v301
      %v310 = vsel %vm294, %v284, %v302
      %v311 = vsel %vm295, %v285, %v303
      %vm312 = vcmp.ge.f32.partialorder %v286, 0.0
      %vm313 = vcmp.ge.f32.partialorder %v287, 0.0
      %v314 = vmul.f32 %v286, 0.01
      %v315 = vmul.f32 %v287, 0.01
      %v316 = vsel %vm312, %v286, %v314
      %v317 = vsel %vm313, %v287, %v315
      %v318 = vld [vmem:[%s263] sm:$0xf]
      %v319 = vld [vmem:[%s263 + $0x4] sm:$0xf]
      %v320 = vunpack.c.l.bf16 %v318
      %v321 = vunpack.c.l.bf16 %v319
      %vm322 = vcmask 523264
      %v323 = vsel %vm322, %v320, 0.0
      %324 = vadd.xlane.f32.xlu0 %v323
      %v325 = vpop.xlane.xlu0 %324
      %v326 = vsel %vm322, %v321, 0.0
      %327 = vadd.xlane.f32.xlu0 %v326
      %v328 = vpop.xlane.xlu0 %327
      %v329 = vmax.f32 %v325, 1.0
      %v330 = vmax.f32 %v328, 1.0
      %v331 = vrcp.pop %v329
      %v332 = vmul.f32 1.0, %v331
      %v333 = vrcp.pop %v330
      %v334 = vmul.f32 1.0, %v333
      %v335 = vpack.c.bf16 %v305, %v304
      %v336 = vpack.c.bf16 %v307, %v306
      %v337 = vpack.c.bf16 %v309, %v308
      %v338 = vpack.c.bf16 %v311, %v310
      %v341 = vunpack.c.l.b16 %v318
      %v342 = vunpack.c.l.b16 %v319
      %v343 = vpack.c.b16 %v342, %v341
      %v345 = vsel %vm322, %v343, 0
      %347 = vmatprep.subr.bf16.mxu0 0
      %348 = vmatpush1.bf16.msra.mxu0 0
      %349 = vmatprep.subr.bf16.mxu0 0
      %350 = vmatpush1.bf16.msra.mxu0 0
      %351 = vmatprep.subr.bf16.mxu0 0
      %352 = vmatpush1.bf16.msra.mxu0 0
      %353 = vmatprep.subr.bf16.mxu0 0
      %354 = vmatpush1.bf16.msra.mxu0 0
      %355 = vmatprep.subr.bf16.mxu0 0
      %356 = vmatpush1.bf16.msra.mxu0 %v338
      %357 = vmatprep.subr.bf16.mxu0 0
      %358 = vmatpush1.bf16.msra.mxu0 %v337
      %359 = vmatprep.subr.bf16.mxu0 0
      %360 = vmatpush1.bf16.msra.mxu0 %v336
      %361 = vmatprep.subr.bf16.mxu0 0
      %362 = vmatpush1.bf16.msra.mxu0 %v335
      %363 = vmatprep.subr.bf16.mxu0 0
      %364 = vmatpush2.bf16.msra.mxu0 0
      %365 = vmatprep.subr.bf16.mxu0 0
      %366 = vmatpush2.bf16.msra.mxu0 0
      %367 = vmatprep.subr.bf16.mxu0 0
      %368 = vmatpush2.bf16.msra.mxu0 0
      %369 = vmatprep.subr.bf16.mxu0 0
      %370 = vmatpush2.bf16.msra.mxu0 0
      %371 = vmatprep.subr.bf16.mxu0 0
      %372 = vmatpush2.bf16.msra.mxu0 0
      %373 = vmatprep.subr.bf16.mxu0 0
      %374 = vmatpush2.bf16.msra.mxu0 0
      %375 = vmatprep.subr.bf16.mxu0 0
      %376 = vmatpush2.bf16.msra.mxu0 0
      %377 = vmatprep.subr.bf16.mxu0 0
      %378 = vmatpush2.bf16.msra.mxu0 0
      %379 = vmatprep.mubr.bf16.mxu0 0
      %380 = vmatmul.mubr.bf16.gmra.mxu0 %v345
      %v381 = vpop.f32.mrf.mxu0
      %v382 = vadd.f32 0.0, %v381
      %v383 = vpop.f32.mrf.mxu0
      %v384 = vpop.f32.mrf.mxu0
      %v385 = vadd.f32 0.0, %v384
      %v386 = vpop.f32.mrf.mxu0
      %387 = vdwg.mxu0
      %v388 = vmul.f32 %v382, %v332
      %v389 = vmul.f32 %v385, %v334
      %v390 = vpack.c.bf16 %v389, %v388
      %v391 = vld [vmem:[%s3] sm:$0xf]
      %v392 = vld [vmem:[%s3 + $0x4] sm:$0xf]
      %v393 = vld [vmem:[%s3 + $0x8] sm:$0xf]
      %v394 = vld [vmem:[%s3 + $0xc] sm:$0xf]
      %v395 = vpack.c.bf16 %v317, %v316
      %v396 = vld [vmem:[%s4] sm:$0xf]
      %v397 = vld [vmem:[%s4 + $0x4] sm:$0xf]
      %v398 = vld [vmem:[%s4 + $0x8] sm:$0xf]
      %v399 = vld [vmem:[%s4 + $0xc] sm:$0xf]
      %v404 = vunpack.c.l.b16 %v396
      %v405 = vunpack.c.l.b16 %v397
      %v406 = vunpack.c.l.b16 %v398
      %v407 = vunpack.c.l.b16 %v399
      %v408 = vpack.c.b16 %v405, %v404
      %v409 = vpack.c.b16 %v407, %v406
      %vm412 = vcmask 261120
      %v414 = vsel %vm412, %v395, 0
      %416 = vmatprep.subr.bf16.mxu0 0
      %417 = vmatpush1.bf16.msra.mxu0 0
      %418 = vmatprep.subr.bf16.mxu0 0
      %419 = vmatpush1.bf16.msra.mxu0 0
      %420 = vmatprep.subr.bf16.mxu0 0
      %421 = vmatpush1.bf16.msra.mxu0 0
      %422 = vmatprep.subr.bf16.mxu0 0
      %423 = vmatpush1.bf16.msra.mxu0 0
      %424 = vmatprep.subr.bf16.mxu0 0
      %425 = vmatpush1.bf16.msra.mxu0 0
      %426 = vmatprep.subr.bf16.mxu0 0
      %427 = vmatpush1.bf16.msra.mxu0 0
      %428 = vmatprep.subr.bf16.mxu0 0
      %429 = vmatpush1.bf16.msra.mxu0 %v409
      %430 = vmatprep.subr.bf16.mxu0 0
      %431 = vmatpush1.bf16.msra.mxu0 %v408
      %432 = vmatprep.subr.bf16.mxu0 0
      %433 = vmatpush2.bf16.msra.mxu0 0
      %434 = vmatprep.subr.bf16.mxu0 0
      %435 = vmatpush2.bf16.msra.mxu0 0
      %436 = vmatprep.subr.bf16.mxu0 0
      %437 = vmatpush2.bf16.msra.mxu0 0
      %438 = vmatprep.subr.bf16.mxu0 0
      %439 = vmatpush2.bf16.msra.mxu0 0
      %440 = vmatprep.subr.bf16.mxu0 0
      %441 = vmatpush2.bf16.msra.mxu0 0
      %442 = vmatprep.subr.bf16.mxu0 0
      %443 = vmatpush2.bf16.msra.mxu0 0
      %444 = vmatprep.subr.bf16.mxu0 0
      %445 = vmatpush2.bf16.msra.mxu0 0
      %446 = vmatprep.subr.bf16.mxu0 0
      %447 = vmatpush2.bf16.msra.mxu0 0
      %448 = vmatprep.mubr.bf16.mxu0 0
      %449 = vmatmul.mubr.bf16.gmra.mxu0 %v414
      %v450 = vpop.f32.mrf.mxu0
      %v451 = vadd.f32 0.0, %v450
      %v452 = vpop.f32.mrf.mxu0
      %v453 = vpop.f32.mrf.mxu0
      %v454 = vadd.f32 0.0, %v453
      %v455 = vpop.f32.mrf.mxu0
      %456 = vdwg.mxu0
      %v461 = vunpack.c.l.b16 %v391
      %v462 = vunpack.c.l.b16 %v392
      %v463 = vunpack.c.l.b16 %v393
      %v464 = vunpack.c.l.b16 %v394
      %v465 = vpack.c.b16 %v462, %v461
      %v466 = vpack.c.b16 %v464, %v463
      %v470 = vsel %vm412, %v390, 0
      %472 = vmatprep.subr.bf16.mxu0 0
      %473 = vmatpush1.bf16.msra.mxu0 0
      %474 = vmatprep.subr.bf16.mxu0 0
      %475 = vmatpush1.bf16.msra.mxu0 0
      %476 = vmatprep.subr.bf16.mxu0 0
      %477 = vmatpush1.bf16.msra.mxu0 0
      %478 = vmatprep.subr.bf16.mxu0 0
      %479 = vmatpush1.bf16.msra.mxu0 0
      %480 = vmatprep.subr.bf16.mxu0 0
      %481 = vmatpush1.bf16.msra.mxu0 0
      %482 = vmatprep.subr.bf16.mxu0 0
      %483 = vmatpush1.bf16.msra.mxu0 0
      %484 = vmatprep.subr.bf16.mxu0 0
      %485 = vmatpush1.bf16.msra.mxu0 %v466
      %486 = vmatprep.subr.bf16.mxu0 0
      %487 = vmatpush1.bf16.msra.mxu0 %v465
      %488 = vmatprep.subr.bf16.mxu0 0
      %489 = vmatpush2.bf16.msra.mxu0 0
      %490 = vmatprep.subr.bf16.mxu0 0
      %491 = vmatpush2.bf16.msra.mxu0 0
      %492 = vmatprep.subr.bf16.mxu0 0
      %493 = vmatpush2.bf16.msra.mxu0 0
      %494 = vmatprep.subr.bf16.mxu0 0
      %495 = vmatpush2.bf16.msra.mxu0 0
      %496 = vmatprep.subr.bf16.mxu0 0
      %497 = vmatpush2.bf16.msra.mxu0 0
      %498 = vmatprep.subr.bf16.mxu0 0
      %499 = vmatpush2.bf16.msra.mxu0 0
      %500 = vmatprep.subr.bf16.mxu0 0
      %501 = vmatpush2.bf16.msra.mxu0 0
      %502 = vmatprep.subr.bf16.mxu0 0
      %503 = vmatpush2.bf16.msra.mxu0 0
      %504 = vmatprep.mubr.bf16.mxu0 0
      %505 = vmatmul.mubr.bf16.gmra.mxu0 %v470
      %v506 = vpop.f32.mrf.mxu0
      %v507 = vadd.f32 %v451, %v506
      %v508 = vpop.f32.mrf.mxu0
      %v509 = vpop.f32.mrf.mxu0
      %v510 = vadd.f32 %v454, %v509
      %v511 = vpop.f32.mrf.mxu0
      %512 = vdwg.mxu0
      %v513 = vld [vmem:[%s5] sm:$0x1]
      %v515 = vlaneseq
      %v516 = vshrl.u32 %v515, 7
      %v517 = vsub.s32 0, %v516
      %v518 = vrot.slane %v513, %v517
      %v520 = vadd.f32 %v507, %v518
      %v521 = vadd.f32 %v510, %v518
      %522 = vst.msk [vmem:[%s275] sm:$0xff] %vm412, %v520
      %523 = vst.msk [vmem:[%s275 + $0x8] sm:$0xff] %vm412, %v521
      %s524 = smul.u32 2, %s17
      %p525 = scmp.lt.s32.totalorder %s524, 7
      %s526 = scalar_select %p525, %s524, 7
      %s527 = smul.addr %s526, 8
      %s528 = scalar_lea.vmem %s6, %s527
      // Predicated region
      $region45: #{student_forward.4} parent=43 // pred_check
        %p529 = pneg %p171
      $region46: #{student_forward.4} parent=43 // pred_check_branch
        %531 = sbr.rel (%p529) target = $region48
      $region47: #{student_forward.4} parent=43 // pred_region
        %s532 = smul.u32 2, %s17
      $region48: #{student_forward.4} parent=43 // pred_fallthru
        _
    $region44: #{student_forward.4} parent=5 // pred_fallthru
      _
    %p533 = scmp.le.s32.totalorder 2, %s12
    // Predicated region
    $region49: #{student_forward.4} parent=5 // pred_check
      %p534 = pneg %p533
    $region50: #{student_forward.4} parent=5 // pred_check_branch
      %536 = sbr.rel (%p534) target = $region52
    $region51: #{student_forward.4} parent=5 // pred_region
      %s537 = ssub.s32 %s12, 2
      // Predicated region
      $region53: #{student_forward.4} parent=51 // pred_check
        %p538 = pneg %p177
      $region54: #{student_forward.4} parent=51 // pred_check_branch
        %540 = sbr.rel (%p538) target = $region56
      $region55: #{student_forward.4} parent=51 // pred_region
        %s541 = smul.u32 2, %s18
        %p542 = scmp.lt.s32.totalorder %s541, 7
        %s543 = scalar_select %p542, %s541, 7
        %s544 = smul.addr %s543, 8
        %s545 = scalar_lea.vmem %s6, %s544
      $region56: #{student_forward.4} parent=51 // pred_fallthru
        _
    $region52: #{student_forward.4} parent=5 // pred_fallthru
      _
  $region6: #{student_forward.4} parent=0 // loop_footer
    %s16 = sadd.s32 1, %s12
  $region7: #{student_forward.4} parent=0 // loop_footer_branch
    %11 = sbr.rel target = $region3
  $region8: #{student_forward.4} parent=0 // loop_exit
    _

</llo_original>
